<compile_context>
chip_gen: v5e
topology: v5e:2x2
jax: 0.10.0
libtpu: 0.0.40
codegen_flags: <defaults>
</compile_context>

<pallas_src>
import jax
import jax.numpy as jnp
from jax import lax
from jax.experimental import pallas as pl
from jax.experimental.pallas import tpu as pltpu


def _round_up(v, m):
    return ((v + m - 1) // m) * m


def _vmem_capacity_bytes():
    try:
        return int(pltpu.get_tpu_info().vmem_capacity_bytes)
    except Exception:
        return 64 * 1024 * 1024          # conservative fallback, valid everywhere


def _default_exp_dtype(compute_dtype):
    """bf16 exp on v6e/v7x (2x EUP rate); f32 on <=v5 (no bf16 EUP/VPU)."""
    if jnp.dtype(compute_dtype) != jnp.dtype(jnp.bfloat16):
        return jnp.float32
    try:
        kind = jax.devices()[0].device_kind.lower()
    except Exception:
        return jnp.float32
    if any(tag in kind for tag in ("v2", "v3", "v4", "v5")):
        return jnp.float32
    return jnp.bfloat16


def _vmem_estimate(TI, Pp, Cp, Cip, io_bytes, cbytes, needs_mask):
    est = 0
    est += 2 * Pp * Cp * io_bytes                 # x block (double-buffered)
    est += 2 * Pp * Cp * io_bytes                 # out block
    est += 2 * 4 * Cp * Cip * cbytes              # wtheta + wpg + ww (double-buffered)
    est += 2 * (Cip + 2 * Cip + Cp + 1) * 4       # biases
    if needs_mask:
        est += 2 * Pp * 4                         # additive column mask
    est += Cip * Pp * cbytes                      # thetaT scratch
    est += Cip * Pp * 4                           # acc scratch (f32)
    est += TI * Pp * (4 + 4 + cbytes)             # f / (f - m) / p slab temporaries
    est += TI * 3 * Cip * 4                       # per-step projection temporaries
    est += Pp * Cp * 4                            # finalize out_res (f32)
    return est


def _choose_tile(P, tile_i, Cp, Cip, io_bytes, cbytes, budget):
    """Pick (TI, Pp, needs_mask): prefer TI that divides P (no padding, no
    per-step mask), and shrink TI until the VMEM estimate fits the budget."""
    base = 16                                     # bf16 sublane-pack alignment
    cands = []
    if P % base == 0:
        t = min(_round_up(tile_i, base), P)
        for ti in range(t, base - 1, -base):
            if P % ti == 0:
                cands.append((ti, P, False))
    t = min(_round_up(tile_i, base), _round_up(P, base))
    for ti in range(t, base - 1, -base):
        pp = _round_up(P, ti)
        cands.append((ti, pp, pp != P))
    for ti, pp, nm in cands:
        if _vmem_estimate(ti, pp, Cp, Cip, io_bytes, cbytes, nm) <= budget:
            return ti, pp, nm
    ti = base
    pp = _round_up(P, ti)
    return ti, pp, pp != P


def _make_kernel(TI, P, Pp, Cip, needs_mask, compute_dtype, exp_dtype):
    def kernel(*refs):
        if needs_mask:
            (x_ref, wth_ref, bth_ref, wpg_ref, bpg_ref, ww_ref, bw_ref,
             msk_ref, o_ref, thetaT_sc, acc_sc) = refs
        else:
            (x_ref, wth_ref, bth_ref, wpg_ref, bpg_ref, ww_ref, bw_ref,
             o_ref, thetaT_sc, acc_sc) = refs
            msk_ref = None

        k = pl.program_id(1)

        # ---- once per batch element (k == 0): thetaT for ALL positions + acc init.
        # thetaT[ci, j] = sum_c Wtheta[ci, c] * x[j, c] + b_theta[ci]
        # (computed directly on the MXU; no XLU transpose).
        @pl.when(k == 0)
        def _init():
            xf = x_ref[0].astype(compute_dtype)                         # (Pp, Cp)
            thT = lax.dot_general(wth_ref[...], xf,
                                  (((1,), (1,)), ((), ())),
                                  preferred_element_type=jnp.float32)   # (Cip, Pp)
            thetaT_sc[...] = (thT + bth_ref[...]).astype(compute_dtype)
            acc_sc[...] = jnp.zeros_like(acc_sc)

        # ---- per i-tile: project phi/g for this tile only, build the (TI, Pp)
        # attention slab, softmax it row-wise, accumulate g-weighted reduction.
        i0 = pl.multiple_of(k * TI, TI)
        x_t = x_ref[0, pl.ds(i0, TI), :].astype(compute_dtype)          # (TI, Cp)
        pg = jnp.dot(x_t, wpg_ref[...],
                     preferred_element_type=jnp.float32) + bpg_ref[...]  # (TI, 2*Cip)
        phi_t = pg[:, :Cip].astype(compute_dtype)                        # (TI, Cip)
        g_t = pg[:, Cip:]                                                # (TI, Cip) f32

        f = jnp.dot(phi_t, thetaT_sc[...],
                    preferred_element_type=jnp.float32)                  # (TI, Pp)
        if needs_mask:
            f = f + msk_ref[...]                  # additive -1e30 on padded j cols

        m = jnp.max(f, axis=-1, keepdims=True)                           # XLU
        p = jnp.exp((f - m).astype(exp_dtype))                           # EUP (bf16 on v6e/v7x)
        p_mm = p.astype(compute_dtype)                                   # MXU operand

        # Row-sum on the MXU (it has slack; the XLU already does the row max).
        ones_col = jnp.ones((Pp, 1), dtype=compute_dtype)
        l = jnp.dot(p_mm, ones_col, preferred_element_type=jnp.float32)  # (TI, 1)
        inv_l = pl.reciprocal(l, approx=True)
        if needs_mask:
            rows = i0 + lax.broadcasted_iota(jnp.int32, (TI, 1), 0)
            inv_l = jnp.where(rows < P, inv_l, 0.0)   # padded i rows contribute 0

        # Normalize on the g side (TI x Cip), not on the (TI, Pp) slab.
        g_scaled = (g_t * inv_l).astype(compute_dtype)                   # (TI, Cip)

        # acc[ci, j] += sum_i g_scaled[i, ci] * p[i, j]  (only the small g tile
        # participates in the dim-0 contraction; the slab is never transposed).
        acc_sc[...] += lax.dot_general(g_scaled, p_mm,
                                       (((0,), (0,)), ((), ())),
                                       preferred_element_type=jnp.float32)

        # ---- finalize (k == last): w-projection + residual (add in f32 regs).
        @pl.when(k == pl.num_programs(1) - 1)
        def _finalize():
            out_res = lax.dot_general(acc_sc[...].astype(compute_dtype), ww_ref[...],
                                      (((0,), (0,)), ((), ())),
                                      preferred_element_type=jnp.float32) + bw_ref[...]
            o_ref[0] = (x_ref[0].astype(jnp.float32) + out_res).astype(o_ref.dtype)

    return kernel


def nonlocal_layer_nhwc(x_npc, params, *, tile_i=256,
                        compute_dtype=jnp.bfloat16,
                        io_dtype=jnp.bfloat16,
                        exp_dtype=None):
    """NonLocal layer on channel-last, spatially flattened input.

    x_npc: (N, P, C) with P = H*W.  Returns (N, P, C) in `io_dtype`.
    Note: x/out are carried in bf16 by default (residual added in f32
    registers); pass io_dtype=jnp.float32 if an exact f32 residual is needed.
    """
    n, P, c = x_npc.shape
    ci = c // 2
    assert ci >= 1, "cin must be >= 2"

    Cp = _round_up(c, 128)
    Cip = _round_up(ci, 128)
    if exp_dtype is None:
        exp_dtype = _default_exp_dtype(compute_dtype)

    io_bytes = jnp.dtype(io_dtype).itemsize
    cbytes = jnp.dtype(compute_dtype).itemsize

    # VMEM-budgeted tile selection (v7x: 64 MiB; v5e/v6e: 128 MiB -- no 64 MiB clamp).
    vmem_cap = _vmem_capacity_bytes()
    budget = max(vmem_cap - 12 * 1024 * 1024, 24 * 1024 * 1024)
    TI, Pp, needs_mask = _choose_tile(P, tile_i, Cp, Cip, io_bytes, cbytes, budget)
    nk = Pp // TI

    # ---- operand prep (padding only when alignment truly requires it) -------
    xin = x_npc.astype(io_dtype)
    if (Pp, Cp) != (P, c):
        # Real-world shapes (C multiple of 128, P 16-aligned) skip this pad and
        # the final slice entirely; for tiny/toy channel counts it is unavoidable.
        xin = jnp.pad(xin, ((0, 0), (0, Pp - P), (0, Cp - c)))

    def pad2(a, rows, cols, dtype):
        a = a.astype(jnp.float32)
        a = jnp.pad(a, ((0, rows - a.shape[0]), (0, cols - a.shape[1])))
        return a.astype(dtype)

    wth = pad2(params["theta_w"], Cip, Cp, compute_dtype)            # (Cip, Cp)
    bth = pad2(params["theta_b"].reshape(-1, 1), Cip, 1, jnp.float32)  # (Cip, 1)
    wpg = jnp.concatenate([pad2(params["phi_w"].T, Cp, Cip, compute_dtype),
                           pad2(params["g_w"].T, Cp, Cip, compute_dtype)],
                          axis=1)                                    # (Cp, 2*Cip)
    bpg = jnp.concatenate([pad2(params["phi_b"].reshape(1, -1), 1, Cip, jnp.float32),
                           pad2(params["g_b"].reshape(1, -1), 1, Cip, jnp.float32)],
                          axis=1)                                    # (1, 2*Cip)
    ww = pad2(params["w_w"].T, Cip, Cp, compute_dtype)               # (Cip, Cp)
    bw = pad2(params["w_b"].reshape(1, -1), 1, Cp, jnp.float32)      # (1, Cp)

    operands = [xin, wth, bth, wpg, bpg, ww, bw]
    # NOTE: the four weight/bias blocks have constant index maps; on v7x one
    # could single-buffer them (pipeline_mode=pl.Buffered(1)) to save VMEM.
    in_specs = [
        pl.BlockSpec((1, Pp, Cp), lambda b, k: (b, 0, 0)),   # x, resident over k
        pl.BlockSpec((Cip, Cp), lambda b, k: (0, 0)),        # theta W
        pl.BlockSpec((Cip, 1), lambda b, k: (0, 0)),         # theta b (column)
        pl.BlockSpec((Cp, 2 * Cip), lambda b, k: (0, 0)),    # [phi | g] W
        pl.BlockSpec((1, 2 * Cip), lambda b, k: (0, 0)),     # [phi | g] b
        pl.BlockSpec((Cip, Cp), lambda b, k: (0, 0)),        # w W
        pl.BlockSpec((1, Cp), lambda b, k: (0, 0)),          # w b
    ]
    if needs_mask:
        j = jnp.arange(Pp, dtype=jnp.int32).reshape(1, Pp)
        colmask = jnp.where(j < P, 0.0, -1e30).astype(jnp.float32)
        operands.append(colmask)
        in_specs.append(pl.BlockSpec((1, Pp), lambda b, k: (0, 0)))

    kernel = _make_kernel(TI, P, Pp, Cip, needs_mask, compute_dtype, exp_dtype)

    est = _vmem_estimate(TI, Pp, Cp, Cip, io_bytes, cbytes, needs_mask)
    vmem_limit = int(min(max(int(est * 1.25), 32 * 1024 * 1024),
                         vmem_cap - 4 * 1024 * 1024))

    grid_spec = pltpu.PrefetchScalarGridSpec(
        num_scalar_prefetch=0,
        grid=(n, nk),
        in_specs=in_specs,
        out_specs=pl.BlockSpec((1, Pp, Cp), lambda b, k: (b, 0, 0)),
        scratch_shapes=[
            pltpu.VMEM((Cip, Pp), compute_dtype),   # thetaT
            pltpu.VMEM((Cip, Pp), jnp.float32),     # result accumulator (transposed)
        ],
    )

    # Batch axis parallel (megacore); i-reduction axis MUST stay sequential.
    # (For n == 1 on v7x a second parallel axis over j-halves would keep both
    #  TensorCores busy; omitted here.)
    out = pl.pallas_call(
        kernel,
        out_shape=jax.ShapeDtypeStruct((n, Pp, Cp), io_dtype),
        grid_spec=grid_spec,
        compiler_params=pltpu.CompilerParams(
            dimension_semantics=("parallel", "arbitrary"),
            vmem_limit_bytes=vmem_limit),
    )(*operands)

    if (Pp, Cp) != (P, c):
        out = out[:, :P, :c]
    return out


def nonlocal_layer(x_nchw, params, **kwargs):
    """PyTorch-style NCHW interface.  NHWC callers should prefer
    nonlocal_layer_nhwc to avoid the layout transposes (extra HBM traffic)."""
    n, c, h, w = x_nchw.shape
    x = jnp.transpose(x_nchw, (0, 2, 3, 1)).reshape(n, h * w, c)
    out = nonlocal_layer_nhwc(x, params, **kwargs)
    out = out.reshape(n, h, w, c).transpose(0, 3, 1, 2)
    return out.astype(x_nchw.dtype)


def nonlocal_reference(x_nchw, params, matmul_dtype=jnp.float32):
    """Pure-JAX reference mirroring the PyTorch forward (NCHW).  matmul_dtype
    emulates the kernel's bf16-matmul / f32-accumulate precision if desired."""
    n, c, h, w = x_nchw.shape
    ci = c // 2
    md = matmul_dtype

    def conv1x1(x, W, b):
        y = jnp.einsum('nchw,oc->nohw', x.astype(md), W.astype(md),
                       preferred_element_type=jnp.float32)
        return y + b[None, :, None, None]

    g_x = conv1x1(x_nchw, params['g_w'], params['g_b']).reshape(n, ci, -1)
    phi_x = conv1x1(x_nchw, params['phi_w'], params['phi_b']).reshape(n, ci, -1)
    theta_x = conv1x1(x_nchw, params['theta_w'], params['theta_b']).reshape(n, ci, -1)
    f = jnp.einsum('nki,nkj->nij', phi_x.astype(md), theta_x.astype(md),
                   preferred_element_type=jnp.float32)
    f = jax.nn.softmax(f, axis=-1)
    y = jnp.einsum('nci,nij->ncj', g_x.astype(md), f.astype(md),
                   preferred_element_type=jnp.float32).reshape(n, ci, h, w)
    res = conv1x1(y, params['w_w'], params['w_b'])
    return x_nchw.astype(jnp.float32) + res


def init_params(key, cin):
    ci = cin // 2
    ks = jax.random.split(key, 8)
    s1 = 1.0 / jnp.sqrt(cin)   # fan_in of the cin->ci 1x1 convs
    s2 = 1.0 / jnp.sqrt(ci)    # fan_in of the ci->cin 1x1 conv
    return {
        "theta_w": jax.random.uniform(ks[0], (ci, cin), jnp.float32, -s1, s1),
        "theta_b": jax.random.uniform(ks[1], (ci,),     jnp.float32, -s1, s1),
        "phi_w":   jax.random.uniform(ks[2], (ci, cin), jnp.float32, -s1, s1),
        "phi_b":   jax.random.uniform(ks[3], (ci,),     jnp.float32, -s1, s1),
        "g_w":     jax.random.uniform(ks[4], (ci, cin), jnp.float32, -s1, s1),
        "g_b":     jax.random.uniform(ks[5], (ci,),     jnp.float32, -s1, s1),
        "w_w":     jax.random.uniform(ks[6], (cin, ci), jnp.float32, -s2, s2),
        "w_b":     jax.random.uniform(ks[7], (cin,),    jnp.float32, -s2, s2),
    }


if __name__ == "__main__":
    key = jax.random.PRNGKey(0)
    kx, kp = jax.random.split(key)

    N, C, H, W = 2, 4, 16, 16
    x = jax.random.normal(kx, (N, C, H, W), dtype=jnp.float32)
    params = init_params(kp, C)

    # tile_i=128 with P=256 exercises the multi-step i-reduction path
    # (init at k==0, accumulate, finalize at k==last).
    out = nonlocal_layer(x, params, tile_i=128)
    out = jax.block_until_ready(out)
    assert out.shape == (N, C, H, W)
    out_f32 = out.astype(jnp.float32)

    # Precision-matched reference: x rounded to the kernel's bf16 I/O, bf16 matmuls.
    x_io = x.astype(jnp.bfloat16).astype(jnp.float32)
    ref_bf16 = nonlocal_reference(x_io, params, matmul_dtype=jnp.bfloat16)
    assert jnp.allclose(out_f32, ref_bf16, atol=3e-2, rtol=3e-2), \
        "mismatch vs bf16-matmul reference"

    # Loose sanity check against the full-f32 PyTorch semantics (bf16 MXU/IO is
    # a deliberate throughput choice; error is O(1e-2)).
    ref_f32 = nonlocal_reference(x, params, matmul_dtype=jnp.float32)
    assert jnp.allclose(out_f32, ref_f32, atol=1.5e-1, rtol=1.5e-1), \
        "mismatch vs f32 reference"

    print("KERNEL_OK")
</pallas_src>

<mosaic_0001>
module attributes {stable_mosaic.version = 11 : i64} {
  func.func @kernel(%arg0: i32, %arg1: i32, %arg2: memref<1x256x128xbf16, #tpu.memory_space<vmem>>, %arg3: memref<128x128xbf16, #tpu.memory_space<vmem>>, %arg4: memref<128x1xf32, #tpu.memory_space<vmem>>, %arg5: memref<128x256xbf16, #tpu.memory_space<vmem>>, %arg6: memref<1x256xf32, #tpu.memory_space<vmem>>, %arg7: memref<128x128xbf16, #tpu.memory_space<vmem>>, %arg8: memref<1x128xf32, #tpu.memory_space<vmem>>, %arg9: memref<1x256x128xbf16, #tpu.memory_space<vmem>>, %arg10: memref<128x256xbf16, #tpu.memory_space<vmem>>, %arg11: memref<128x256xf32, #tpu.memory_space<vmem>>) attributes {dimension_semantics = [#tpu.dimension_semantics<parallel>, #tpu.dimension_semantics<arbitrary>], iteration_bounds = array<i64: 2, 2>, scalar_prefetch = 0 : i64, scratch_operands = 2 : i64, tpu.core_type = #tpu.core_type<tc>, window_params = [{transform_indices = @transform_0, window_bounds = array<i64: 1, 256, 128>}, {pipeline_mode = #tpu.pipeline_mode<synchronous>, transform_indices = @transform_1, window_bounds = array<i64: 128, 128>}, {pipeline_mode = #tpu.pipeline_mode<synchronous>, transform_indices = @transform_2, window_bounds = array<i64: 128, 1>}, {pipeline_mode = #tpu.pipeline_mode<synchronous>, transform_indices = @transform_3, window_bounds = array<i64: 128, 256>}, {pipeline_mode = #tpu.pipeline_mode<synchronous>, transform_indices = @transform_4, window_bounds = array<i64: 1, 256>}, {pipeline_mode = #tpu.pipeline_mode<synchronous>, transform_indices = @transform_5, window_bounds = array<i64: 128, 128>}, {pipeline_mode = #tpu.pipeline_mode<synchronous>, transform_indices = @transform_6, window_bounds = array<i64: 1, 128>}, {transform_indices = @transform_7, window_bounds = array<i64: 1, 256, 128>}]} {
    %c0_i32 = arith.constant 0 : i32
    %0 = arith.cmpi eq, %arg1, %c0_i32 : i32
    %1 = arith.extui %0 : i1 to i32
    %c0_i32_0 = arith.constant 0 : i32
    %2 = arith.cmpi ne, %1, %c0_i32_0 : i32
    scf.if %2 {
      %c0_18 = arith.constant 0 : index
      %c0_19 = arith.constant 0 : index
      %c0_20 = arith.constant 0 : index
      %37 = vector.load %arg2[%c0_18, %c0_19, %c0_20] : memref<1x256x128xbf16, #tpu.memory_space<vmem>>, vector<1x256x128xbf16>
      %38 = vector.shape_cast %37 : vector<1x256x128xbf16> to vector<256x128xbf16>
      %c0_21 = arith.constant 0 : index
      %c0_22 = arith.constant 0 : index
      %39 = vector.load %arg3[%c0_21, %c0_22] : memref<128x128xbf16, #tpu.memory_space<vmem>>, vector<128x128xbf16>
      %cst_23 = arith.constant dense<0.000000e+00> : vector<128x256xf32>
      %40 = tpu.matmul %39, %38, %cst_23 {dimension_numbers = #tpu.dot_dimension_numbers<[1], [1], [0], [0], [0, 0, 1, 0], [], []>} : vector<128x128xbf16>, vector<256x128xbf16>, vector<128x256xf32> -> vector<128x256xf32>
      %c0_24 = arith.constant 0 : index
      %c0_25 = arith.constant 0 : index
      %41 = vector.load %arg4[%c0_24, %c0_25] : memref<128x1xf32, #tpu.memory_space<vmem>>, vector<128x1xf32>
      %42 = vector.broadcast %41 : vector<128x1xf32> to vector<128x256xf32>
      %43 = arith.addf %40, %42 : vector<128x256xf32>
      %44 = arith.truncf %43 : vector<128x256xf32> to vector<128x256xbf16>
      %c0_26 = arith.constant 0 : index
      %c0_27 = arith.constant 0 : index
      %45 = vector.load %arg10[%c0_26, %c0_27] : memref<128x256xbf16, #tpu.memory_space<vmem>>, vector<128x256xbf16>
      tpu.vector_store %arg10[%c0_26, %c0_27], %44 {strides = array<i32>} : memref<128x256xbf16, #tpu.memory_space<vmem>>, vector<128x256xbf16>,
      %cst_28 = arith.constant 0.000000e+00 : f32
      %46 = vector.broadcast %cst_28 : f32 to vector<128x256xf32>
      %c0_29 = arith.constant 0 : index
      %c0_30 = arith.constant 0 : index
      %47 = vector.load %arg11[%c0_29, %c0_30] : memref<128x256xf32, #tpu.memory_space<vmem>>, vector<128x256xf32>
      tpu.vector_store %arg11[%c0_29, %c0_30], %46 {strides = array<i32>} : memref<128x256xf32, #tpu.memory_space<vmem>>, vector<128x256xf32>,
    } else {
    }
    %c128_i32 = arith.constant 128 : i32
    %3 = arith.muli %arg1, %c128_i32 : i32
    %4 = tpu.assume_multiple %3, 128 : i32
    %c0 = arith.constant 0 : index
    %5 = arith.index_cast %4 : i32 to index
    %c0_1 = arith.constant 0 : index
    %6 = vector.load %arg2[%c0, %5, %c0_1] : memref<1x256x128xbf16, #tpu.memory_space<vmem>>, vector<1x128x128xbf16>
    %7 = vector.shape_cast %6 : vector<1x128x128xbf16> to vector<128x128xbf16>
    %c0_2 = arith.constant 0 : index
    %c0_3 = arith.constant 0 : index
    %8 = vector.load %arg5[%c0_2, %c0_3] : memref<128x256xbf16, #tpu.memory_space<vmem>>, vector<128x256xbf16>
    %cst = arith.constant dense<0.000000e+00> : vector<128x256xf32>
    %9 = tpu.matmul %7, %8, %cst {dimension_numbers = #tpu.dot_dimension_numbers<[1], [0], [0], [1], [0, 0, 1, 1], [], []>} : vector<128x128xbf16>, vector<128x256xbf16>, vector<128x256xf32> -> vector<128x256xf32>
    %c0_4 = arith.constant 0 : index
    %c0_5 = arith.constant 0 : index
    %10 = vector.load %arg6[%c0_4, %c0_5] : memref<1x256xf32, #tpu.memory_space<vmem>>, vector<1x256xf32>
    %11 = vector.broadcast %10 : vector<1x256xf32> to vector<128x256xf32>
    %12 = arith.addf %9, %11 : vector<128x256xf32>
    %13 = vector.extract_strided_slice %12 {offsets = [0, 0], sizes = [128, 128], strides = [1, 1]} : vector<128x256xf32> to vector<128x128xf32>
    %14 = arith.truncf %13 : vector<128x128xf32> to vector<128x128xbf16>
    %15 = vector.extract_strided_slice %12 {offsets = [0, 128], sizes = [128, 128], strides = [1, 1]} : vector<128x256xf32> to vector<128x128xf32>
    %c0_6 = arith.constant 0 : index
    %c0_7 = arith.constant 0 : index
    %16 = vector.load %arg10[%c0_6, %c0_7] : memref<128x256xbf16, #tpu.memory_space<vmem>>, vector<128x256xbf16>
    %cst_8 = arith.constant dense<0.000000e+00> : vector<128x256xf32>
    %17 = tpu.matmul %14, %16, %cst_8 {dimension_numbers = #tpu.dot_dimension_numbers<[1], [0], [0], [1], [0, 0, 1, 1], [], []>} : vector<128x128xbf16>, vector<128x256xbf16>, vector<128x256xf32> -> vector<128x256xf32>
    %cst_9 = arith.constant dense<0xFF800000> : vector<128xf32>
    %18 = vector.multi_reduction <maximumf>, %17, %cst_9 [1] : vector<128x256xf32> to vector<128xf32>
    %19 = vector.shape_cast %18 : vector<128xf32> to vector<128x1xf32>
    %20 = vector.broadcast %19 : vector<128x1xf32> to vector<128x256xf32>
    %21 = arith.subf %17, %20 : vector<128x256xf32>
    %22 = arith.truncf %21 : vector<128x256xf32> to vector<128x256xbf16>
    %23 = math.exp %22 : vector<128x256xbf16>
    %cst_10 = arith.constant 1.000000e+00 : bf16
    %24 = vector.broadcast %cst_10 : bf16 to vector<256x1xbf16>
    %cst_11 = arith.constant dense<0.000000e+00> : vector<128x1xf32>
    %25 = tpu.matmul %23, %24, %cst_11 {dimension_numbers = #tpu.dot_dimension_numbers<[1], [0], [0], [1], [0, 0, 1, 1], [], []>} : vector<128x256xbf16>, vector<256x1xbf16>, vector<128x1xf32> -> vector<128x1xf32>
    %26 = tpu.reciprocal %25 {approx = true} : vector<128x1xf32> -> vector<128x1xf32>
    %27 = vector.broadcast %26 : vector<128x1xf32> to vector<128x128xf32>
    %28 = arith.mulf %15, %27 : vector<128x128xf32>
    %29 = arith.truncf %28 : vector<128x128xf32> to vector<128x128xbf16>
    %c0_12 = arith.constant 0 : index
    %c0_13 = arith.constant 0 : index
    %30 = vector.load %arg11[%c0_12, %c0_13] : memref<128x256xf32, #tpu.memory_space<vmem>>, vector<128x256xf32>
    %cst_14 = arith.constant dense<0.000000e+00> : vector<128x256xf32>
    %31 = tpu.matmul %29, %23, %cst_14 {dimension_numbers = #tpu.dot_dimension_numbers<[0], [0], [1], [1], [0, 1, 1, 1], [], []>} : vector<128x128xbf16>, vector<128x256xbf16>, vector<128x256xf32> -> vector<128x256xf32>
    %32 = arith.addf %30, %31 : vector<128x256xf32>
    %c0_15 = arith.constant 0 : index
    %c0_16 = arith.constant 0 : index
    %33 = vector.load %arg11[%c0_15, %c0_16] : memref<128x256xf32, #tpu.memory_space<vmem>>, vector<128x256xf32>
    tpu.vector_store %arg11[%c0_15, %c0_16], %32 {strides = array<i32>} : memref<128x256xf32, #tpu.memory_space<vmem>>, vector<128x256xf32>,
    %c1_i32 = arith.constant 1 : i32
    %34 = arith.cmpi eq, %arg1, %c1_i32 : i32
    %35 = arith.extui %34 : i1 to i32
    %c0_i32_17 = arith.constant 0 : i32
    %36 = arith.cmpi ne, %35, %c0_i32_17 : i32
    scf.if %36 {
      %c0_18 = arith.constant 0 : index
      %c0_19 = arith.constant 0 : index
      %37 = vector.load %arg11[%c0_18, %c0_19] : memref<128x256xf32, #tpu.memory_space<vmem>>, vector<128x256xf32>
      %38 = arith.truncf %37 : vector<128x256xf32> to vector<128x256xbf16>
      %c0_20 = arith.constant 0 : index
      %c0_21 = arith.constant 0 : index
      %39 = vector.load %arg7[%c0_20, %c0_21] : memref<128x128xbf16, #tpu.memory_space<vmem>>, vector<128x128xbf16>
      %cst_22 = arith.constant dense<0.000000e+00> : vector<256x128xf32>
      %40 = tpu.matmul %38, %39, %cst_22 {dimension_numbers = #tpu.dot_dimension_numbers<[0], [0], [1], [1], [0, 1, 1, 1], [], []>} : vector<128x256xbf16>, vector<128x128xbf16>, vector<256x128xf32> -> vector<256x128xf32>
      %c0_23 = arith.constant 0 : index
      %c0_24 = arith.constant 0 : index
      %41 = vector.load %arg8[%c0_23, %c0_24] : memref<1x128xf32, #tpu.memory_space<vmem>>, vector<1x128xf32>
      %42 = vector.broadcast %41 : vector<1x128xf32> to vector<256x128xf32>
      %43 = arith.addf %40, %42 : vector<256x128xf32>
      %c0_25 = arith.constant 0 : index
      %c0_26 = arith.constant 0 : index
      %c0_27 = arith.constant 0 : index
      %44 = vector.load %arg2[%c0_25, %c0_26, %c0_27] : memref<1x256x128xbf16, #tpu.memory_space<vmem>>, vector<1x256x128xbf16>
      %45 = vector.shape_cast %44 : vector<1x256x128xbf16> to vector<256x128xbf16>
      %46 = arith.extf %45 : vector<256x128xbf16> to vector<256x128xf32>
      %47 = arith.addf %46, %43 : vector<256x128xf32>
      %48 = arith.truncf %47 : vector<256x128xf32> to vector<256x128xbf16>
      %c0_28 = arith.constant 0 : index
      %c0_29 = arith.constant 0 : index
      %c0_30 = arith.constant 0 : index
      %49 = vector.load %arg9[%c0_28, %c0_29, %c0_30] : memref<1x256x128xbf16, #tpu.memory_space<vmem>>, vector<1x256x128xbf16>
      %50 = vector.shape_cast %49 : vector<1x256x128xbf16> to vector<256x128xbf16>
      %51 = vector.shape_cast %48 : vector<256x128xbf16> to vector<1x256x128xbf16>
      tpu.vector_store %arg9[%c0_28, %c0_29, %c0_30], %51 {strides = array<i32>} : memref<1x256x128xbf16, #tpu.memory_space<vmem>>, vector<1x256x128xbf16>,
    } else {
    }
    return
  }
  func.func @transform_0(%arg0: i32, %arg1: i32) -> (i32, i32, i32) {
    %c0_i32 = arith.constant 0 : i32
    %c0_i32_0 = arith.constant 0 : i32
    %c0_i32_1 = arith.constant 0 : i32
    return %arg0, %c0_i32, %c0_i32_0 : i32, i32, i32
  }
  func.func @transform_1(%arg0: i32, %arg1: i32) -> (i32, i32) {
    %c0_i32 = arith.constant 0 : i32
    %c0_i32_0 = arith.constant 0 : i32
    %c0_i32_1 = arith.constant 0 : i32
    return %c0_i32, %c0_i32_0 : i32, i32
  }
  func.func @transform_2(%arg0: i32, %arg1: i32) -> (i32, i32) {
    %c0_i32 = arith.constant 0 : i32
    %c0_i32_0 = arith.constant 0 : i32
    %c0_i32_1 = arith.constant 0 : i32
    return %c0_i32, %c0_i32_0 : i32, i32
  }
  func.func @transform_3(%arg0: i32, %arg1: i32) -> (i32, i32) {
    %c0_i32 = arith.constant 0 : i32
    %c0_i32_0 = arith.constant 0 : i32
    %c0_i32_1 = arith.constant 0 : i32
    return %c0_i32, %c0_i32_0 : i32, i32
  }
  func.func @transform_4(%arg0: i32, %arg1: i32) -> (i32, i32) {
    %c0_i32 = arith.constant 0 : i32
    %c0_i32_0 = arith.constant 0 : i32
    %c0_i32_1 = arith.constant 0 : i32
    return %c0_i32, %c0_i32_0 : i32, i32
  }
  func.func @transform_5(%arg0: i32, %arg1: i32) -> (i32, i32) {
    %c0_i32 = arith.constant 0 : i32
    %c0_i32_0 = arith.constant 0 : i32
    %c0_i32_1 = arith.constant 0 : i32
    return %c0_i32, %c0_i32_0 : i32, i32
  }
  func.func @transform_6(%arg0: i32, %arg1: i32) -> (i32, i32) {
    %c0_i32 = arith.constant 0 : i32
    %c0_i32_0 = arith.constant 0 : i32
    %c0_i32_1 = arith.constant 0 : i32
    return %c0_i32, %c0_i32_0 : i32, i32
  }
  func.func @transform_7(%arg0: i32, %arg1: i32) -> (i32, i32, i32) {
    %c0_i32 = arith.constant 0 : i32
    %c0_i32_0 = arith.constant 0 : i32
    %c0_i32_1 = arith.constant 0 : i32
    return %arg0, %c0_i32, %c0_i32_0 : i32, i32, i32
  }
}

</mosaic_0001>

<llo_original>
// kernel: tpu_custom_call.1
$region0: #{tpu_custom_call.1}
  #allocation0 [shape = 'u32[]', space=smem, size = 0x4, offset = 0x4, fixed_abs, tag = 'smem constant byte address 0x4 - core index']
  #allocation1 [shape = 'u32[72,128]{1,0:T(1,128)}', space=vmem, size = 0x9000, scoped, tag = 'internal scratch']
  #allocation2 [shape = 'bf16[128,256]{1,0:T(8,128)(2,1)}', space=vmem, size = 0x10000, scoped, tag = 'scratch operand']
  #allocation3 [shape = 'f32[128,256]{1,0:T(8,128)}', space=vmem, size = 0x20000, scoped, tag = 'scratch operand']
  %s0 = inlined_call_operand.hbm [shape: bf16[2,256,128], index: 0, kind: input, shape index: {}]
  %s1 = inlined_call_operand.hbm [shape: bf16[128,128], index: 1, kind: input, shape index: {}]
  %s2 = inlined_call_operand.vmem [shape: f32[128,1], index: 2, kind: input, shape index: {}]
  %s3 = inlined_call_operand.vmem [shape: bf16[128,256], index: 3, kind: input, shape index: {}]
  %s4 = inlined_call_operand.vmem [shape: f32[1,256], index: 4, kind: input, shape index: {}]
  %s5 = inlined_call_operand.hbm [shape: bf16[128,128], index: 5, kind: input, shape index: {}]
  %s6 = inlined_call_operand.vmem [shape: f32[1,128], index: 6, kind: input, shape index: {}]
  %s7 = inlined_call_operand.hbm [shape: bf16[2,256,128], index: 7, kind: output, shape index: {}]
  %s8 = sld [smem:[#allocation0]]
  $region81: #{tpu_custom_call.1} parent=0
    _
  %s10 = ssub.s32 1, %s8
  %s11 = scalar_select 0, %s10, %s8
  $region1: #{tpu_custom_call.1} parent=0
    #allocation4 [shape = 'u8[131072]{0}', space=vmem, size = 0x20000, scoped, tag = 'input window, operand 0']
    #allocation5 [shape = 's32[2]{0}', space=sflag, size = 0x8, scoped, tag = 'scoped memory for tpu_custom_call.1']
    #allocation6 [shape = 's32[2]{0}', space=sflag, size = 0x8, scoped, tag = 'scoped memory for tpu_custom_call.1']
    #allocation7 [shape = 'u8[32768]{0}', space=vmem, size = 0x8000, scoped, tag = 'input window, operand 1, single buffered']
    #allocation8 [shape = 's32[1]{0}', space=sflag, size = 0x4, scoped, tag = 'scoped memory for tpu_custom_call.1']
    #allocation9 [shape = 'u8[32768]{0}', space=vmem, size = 0x8000, scoped, tag = 'input window, operand 5, single buffered']
    #allocation10 [shape = 'u8[131072]{0}', space=vmem, size = 0x20000, scoped, tag = 'output window, operand 0']
    %12 = vsyncpa [#allocation5], 0
    %s13 = scalar_lea.sflag [#allocation5], 1
    %14 = vsyncpa %s13, 0
    %15 = vsyncpa [#allocation8], 0
    %16 = vsyncpa [#allocation6], 0
    %s17 = scalar_lea.sflag [#allocation6], 1
    %18 = vsyncpa %s17, 0
    loop: start=0, step=1, limit=6
    $region2: #{tpu_custom_call.1} parent=1 // loop_pre_header
      _
    $region3: #{tpu_custom_call.1} parent=1 // loop_header
      %s20 = sphi 0, %s24
      %p21 = scmp.ge.s32.totalorder %s20, 6
      %s27 = sphi 0, %s39
      %s28 = sphi 0, %s35
      %s29 = sphi 0, %s27
      %s30 = sphi 0, %s28
      %s31 = sphi 0, %s29
      %s32 = sphi 0, %s30
      %s42 = sphi 0, %s44
      %s45 = sphi 0, %s42
      %s46 = sphi 0, %s45
      %s62 = sphi 0, %s46
      %s66 = sphi 0, %s66
      %s68 = sphi 0, %s66
      %s69 = sphi 0, %s68
      %s83 = sphi 0, %s69
      %s87 = sphi 0, %s87
      %s89 = sphi 0, %s87
      %s90 = sphi 0, %s89
      %s104 = sphi 0, %s90
      %s108 = sphi 0, %s108
      %s110 = sphi 0, %s108
      %s111 = sphi 0, %s110
      %s125 = sphi 0, %s111
      %s129 = sphi 0, %s129
      %s131 = sphi 0, %s129
      %s132 = sphi 0, %s131
      %s146 = sphi 0, %s132
      %s150 = sphi 0, %s150
      %s152 = sphi 0, %s150
      %s153 = sphi 0, %s152
      %s167 = sphi 0, %s153
      %s171 = sphi 0, %s171
      %s173 = sphi 0, %s171
      %s174 = sphi 0, %s173
      %s188 = sphi 0, %s174
      %s194 = sphi 0, %s196
      %s197 = sphi 0, %s194
      %s198 = sphi 0, %s197
      %s214 = sphi 0, %s198
    $region4: #{tpu_custom_call.1} parent=1 // loop_header_branch
      %23 = sbr.rel (%p21) target = $region8
    $region5: #{tpu_custom_call.1} parent=1 // loop_body
      %s25 = ssub.s32 %s20, 1
      %s26 = ssub.s32 %s20, 2
      %s33 = sadd.s32 1, %s28
      %p34 = scmp.ge.s32.totalorder %s33, 2
      %s35 = scalar_select %p34, 0, %s33
      %s36 = sadd.s32 1, %s27
      %s37 = scalar_select %p34, %s36, %s27
      %p38 = scmp.ge.s32.totalorder %s37, 2
      %s39 = scalar_select %p38, 0, %s37
      %s40 = ssub.s32 %s27, %s39
      %p41 = scmp.eq.s32.totalorder %s40, 0
      %s43 = sadd.s32 %s42, 1
      %s44 = scalar_select %p41, %s42, %s43
      %p47 = pneg %p41
      %p48 = scmp.eq.s32.totalorder %s20, 3
      %p49 = por %p47, %p48
      %p50 = scmp.ne.s32.totalorder %s42, %s45
      %p51 = scmp.eq.s32.totalorder %s20, 0
      %p52 = por %p50, %p51
      %p53 = scmp.ne.s32.totalorder %s42, %s45
      %p54 = scmp.eq.s32.totalorder %s25, 3
      %p55 = por %p53, %p54
      %p56 = scmp.ne.s32.totalorder %s45, %s46
      %p57 = scmp.eq.s32.totalorder %s25, 0
      %p58 = por %p56, %p57
      %p59 = scmp.ne.s32.totalorder %s45, %s46
      %p60 = scmp.eq.s32.totalorder %s26, 3
      %p61 = por %p59, %p60
      %p63 = scmp.ne.s32.totalorder %s46, %s62
      %p64 = scmp.eq.s32.totalorder %s26, 0
      %p65 = por %p63, %p64
      %s67 = sadd.s32 %s66, 1
      %p70 = scmp.eq.s32.totalorder %s20, 3
      %p71 = scmp.ne.s32.totalorder %s66, %s68
      %p72 = scmp.eq.s32.totalorder %s20, 0
      %p73 = por %p71, %p72
      %p74 = scmp.ne.s32.totalorder %s66, %s68
      %p75 = scmp.eq.s32.totalorder %s25, 3
      %p76 = por %p74, %p75
      %p77 = scmp.ne.s32.totalorder %s68, %s69
      %p78 = scmp.eq.s32.totalorder %s25, 0
      %p79 = por %p77, %p78
      %p80 = scmp.ne.s32.totalorder %s68, %s69
      %p81 = scmp.eq.s32.totalorder %s26, 3
      %p82 = por %p80, %p81
      %p84 = scmp.ne.s32.totalorder %s69, %s83
      %p85 = scmp.eq.s32.totalorder %s26, 0
      %p86 = por %p84, %p85
      %s88 = sadd.s32 %s87, 1
      %p91 = scmp.eq.s32.totalorder %s20, 3
      %p92 = scmp.ne.s32.totalorder %s87, %s89
      %p93 = scmp.eq.s32.totalorder %s20, 0
      %p94 = por %p92, %p93
      %p95 = scmp.ne.s32.totalorder %s87, %s89
      %p96 = scmp.eq.s32.totalorder %s25, 3
      %p97 = por %p95, %p96
      %p98 = scmp.ne.s32.totalorder %s89, %s90
      %p99 = scmp.eq.s32.totalorder %s25, 0
      %p100 = por %p98, %p99
      %p101 = scmp.ne.s32.totalorder %s89, %s90
      %p102 = scmp.eq.s32.totalorder %s26, 3
      %p103 = por %p101, %p102
      %p105 = scmp.ne.s32.totalorder %s90, %s104
      %p106 = scmp.eq.s32.totalorder %s26, 0
      %p107 = por %p105, %p106
      %s109 = sadd.s32 %s108, 1
      %p112 = scmp.eq.s32.totalorder %s20, 3
      %p113 = scmp.ne.s32.totalorder %s108, %s110
      %p114 = scmp.eq.s32.totalorder %s20, 0
      %p115 = por %p113, %p114
      %p116 = scmp.ne.s32.totalorder %s108, %s110
      %p117 = scmp.eq.s32.totalorder %s25, 3
      %p118 = por %p116, %p117
      %p119 = scmp.ne.s32.totalorder %s110, %s111
      %p120 = scmp.eq.s32.totalorder %s25, 0
      %p121 = por %p119, %p120
      %p122 = scmp.ne.s32.totalorder %s110, %s111
      %p123 = scmp.eq.s32.totalorder %s26, 3
      %p124 = por %p122, %p123
      %p126 = scmp.ne.s32.totalorder %s111, %s125
      %p127 = scmp.eq.s32.totalorder %s26, 0
      %p128 = por %p126, %p127
      %s130 = sadd.s32 %s129, 1
      %p133 = scmp.eq.s32.totalorder %s20, 3
      %p134 = scmp.ne.s32.totalorder %s129, %s131
      %p135 = scmp.eq.s32.totalorder %s20, 0
      %p136 = por %p134, %p135
      %p137 = scmp.ne.s32.totalorder %s129, %s131
      %p138 = scmp.eq.s32.totalorder %s25, 3
      %p139 = por %p137, %p138
      %p140 = scmp.ne.s32.totalorder %s131, %s132
      %p141 = scmp.eq.s32.totalorder %s25, 0
      %p142 = por %p140, %p141
      %p143 = scmp.ne.s32.totalorder %s131, %s132
      %p144 = scmp.eq.s32.totalorder %s26, 3
      %p145 = por %p143, %p144
      %p147 = scmp.ne.s32.totalorder %s132, %s146
      %p148 = scmp.eq.s32.totalorder %s26, 0
      %p149 = por %p147, %p148
      %s151 = sadd.s32 %s150, 1
      %p154 = scmp.eq.s32.totalorder %s20, 3
      %p155 = scmp.ne.s32.totalorder %s150, %s152
      %p156 = scmp.eq.s32.totalorder %s20, 0
      %p157 = por %p155, %p156
      %p158 = scmp.ne.s32.totalorder %s150, %s152
      %p159 = scmp.eq.s32.totalorder %s25, 3
      %p160 = por %p158, %p159
      %p161 = scmp.ne.s32.totalorder %s152, %s153
      %p162 = scmp.eq.s32.totalorder %s25, 0
      %p163 = por %p161, %p162
      %p164 = scmp.ne.s32.totalorder %s152, %s153
      %p165 = scmp.eq.s32.totalorder %s26, 3
      %p166 = por %p164, %p165
      %p168 = scmp.ne.s32.totalorder %s153, %s167
      %p169 = scmp.eq.s32.totalorder %s26, 0
      %p170 = por %p168, %p169
      %s172 = sadd.s32 %s171, 1
      %p175 = scmp.eq.s32.totalorder %s20, 3
      %p176 = scmp.ne.s32.totalorder %s171, %s173
      %p177 = scmp.eq.s32.totalorder %s20, 0
      %p178 = por %p176, %p177
      %p179 = scmp.ne.s32.totalorder %s171, %s173
      %p180 = scmp.eq.s32.totalorder %s25, 3
      %p181 = por %p179, %p180
      %p182 = scmp.ne.s32.totalorder %s173, %s174
      %p183 = scmp.eq.s32.totalorder %s25, 0
      %p184 = por %p182, %p183
      %p185 = scmp.ne.s32.totalorder %s173, %s174
      %p186 = scmp.eq.s32.totalorder %s26, 3
      %p187 = por %p185, %p186
      %p189 = scmp.ne.s32.totalorder %s174, %s188
      %p190 = scmp.eq.s32.totalorder %s26, 0
      %p191 = por %p189, %p190
      %s192 = ssub.s32 %s27, %s39
      %p193 = scmp.eq.s32.totalorder %s192, 0
      %s195 = sadd.s32 %s194, 1
      %s196 = scalar_select %p193, %s194, %s195
      %p199 = pneg %p193
      %p200 = scmp.eq.s32.totalorder %s20, 3
      %p201 = por %p199, %p200
      %p202 = scmp.ne.s32.totalorder %s194, %s197
      %p203 = scmp.eq.s32.totalorder %s20, 0
      %p204 = por %p202, %p203
      %p205 = scmp.ne.s32.totalorder %s194, %s197
      %p206 = scmp.eq.s32.totalorder %s25, 3
      %p207 = por %p205, %p206
      %p208 = scmp.ne.s32.totalorder %s197, %s198
      %p209 = scmp.eq.s32.totalorder %s25, 0
      %p210 = por %p208, %p209
      %p211 = scmp.ne.s32.totalorder %s197, %s198
      %p212 = scmp.eq.s32.totalorder %s26, 3
      %p213 = por %p211, %p212
      %p215 = scmp.ne.s32.totalorder %s198, %s214
      %p216 = scmp.eq.s32.totalorder %s26, 0
      %p217 = por %p215, %p216
      %p218 = scmp.le.s32.totalorder 1, %s20
      %p219 = scmp.lt.s32.totalorder %s20, 5
      %p220 = pnand %p218, %p219
      %p221 = pneg %p220
      // Predicated region
      $region9: #{tpu_custom_call.1} parent=5 // pred_check
        _
      $region10: #{tpu_custom_call.1} parent=5 // pred_check_branch
        %223 = sbr.rel (%p220) target = $region12
      $region11: #{tpu_custom_call.1} parent=5 // pred_region
        %s224 = ssub.s32 %s20, 1
        // Predicated region
        $region13: #{tpu_custom_call.1} parent=11 // pred_check
          %p225 = pneg %p79
        $region14: #{tpu_custom_call.1} parent=11 // pred_check_branch
          %227 = sbr.rel (%p225) target = $region16
        $region15: #{tpu_custom_call.1} parent=11 // pred_region
          %229 = vsyncadd [#allocation8], 0
          %s230 = sshll.u32 %s1, 4
          %s231 = int_to_ptr.hbm [resolvable:$true] %s230
          %s232 = sshll.u32 [#allocation7], 4
          %s233 = int_to_ptr.vmem [resolvable:$true] %s232
          %238 = dma.hbm_to_vmem [thread:$0]  %s231, 1024, %s233, [#allocation8], 64, 64, 4
        $region16: #{tpu_custom_call.1} parent=11 // pred_fallthru
          _
        // Predicated region
        $region17: #{tpu_custom_call.1} parent=11 // pred_check
          %p239 = pneg %p100
        $region18: #{tpu_custom_call.1} parent=11 // pred_check_branch
          %241 = sbr.rel (%p239) target = $region20
        $region19: #{tpu_custom_call.1} parent=11 // pred_region
          _
        $region20: #{tpu_custom_call.1} parent=11 // pred_fallthru
          _
        // Predicated region
        $region21: #{tpu_custom_call.1} parent=11 // pred_check
          %p242 = pneg %p121
        $region22: #{tpu_custom_call.1} parent=11 // pred_check_branch
          %244 = sbr.rel (%p242) target = $region24
        $region23: #{tpu_custom_call.1} parent=11 // pred_region
          _
        $region24: #{tpu_custom_call.1} parent=11 // pred_fallthru
          _
        // Predicated region
        $region25: #{tpu_custom_call.1} parent=11 // pred_check
          %p245 = pneg %p142
        $region26: #{tpu_custom_call.1} parent=11 // pred_check_branch
          %247 = sbr.rel (%p245) target = $region28
        $region27: #{tpu_custom_call.1} parent=11 // pred_region
          _
        $region28: #{tpu_custom_call.1} parent=11 // pred_fallthru
          _
        // Predicated region
        $region29: #{tpu_custom_call.1} parent=11 // pred_check
          %p248 = pneg %p163
        $region30: #{tpu_custom_call.1} parent=11 // pred_check_branch
          %250 = sbr.rel (%p248) target = $region32
        $region31: #{tpu_custom_call.1} parent=11 // pred_region
          %252 = vsyncadd [#allocation8], 0
          %s253 = sshll.u32 %s5, 4
          %s254 = int_to_ptr.hbm [resolvable:$true] %s253
          %s255 = sshll.u32 [#allocation9], 4
          %s256 = int_to_ptr.vmem [resolvable:$true] %s255
          %261 = dma.hbm_to_vmem [thread:$0]  %s254, 1024, %s256, [#allocation8], 64, 64, 4
        $region32: #{tpu_custom_call.1} parent=11 // pred_fallthru
          _
        // Predicated region
        $region33: #{tpu_custom_call.1} parent=11 // pred_check
          %p262 = pneg %p184
        $region34: #{tpu_custom_call.1} parent=11 // pred_check_branch
          %264 = sbr.rel (%p262) target = $region36
        $region35: #{tpu_custom_call.1} parent=11 // pred_region
          _
        $region36: #{tpu_custom_call.1} parent=11 // pred_fallthru
          _
      $region12: #{tpu_custom_call.1} parent=5 // pred_fallthru
        _
      %p265 = scmp.lt.s32.totalorder %s20, 4
      // Predicated region
      $region37: #{tpu_custom_call.1} parent=5 // pred_check
        %p266 = pneg %p265
      $region38: #{tpu_custom_call.1} parent=5 // pred_check_branch
        %268 = sbr.rel (%p266) target = $region40
      $region39: #{tpu_custom_call.1} parent=5 // pred_region
        // Predicated region
        $region41: #{tpu_custom_call.1} parent=39 // pred_check
          %p269 = pneg %p52
        $region42: #{tpu_custom_call.1} parent=39 // pred_check_branch
          %271 = sbr.rel (%p269) target = $region44
        $region43: #{tpu_custom_call.1} parent=39 // pred_region
          %s272 = sand.u32 %s42, 1
          %s273 = scalar_lea.sflag [#allocation5], %s272
          %s274 = sand.u32 %s42, 1
          %s275 = smul.addr %s274, 128
          %s276 = scalar_lea.vmem [#allocation4], %s275
          %278 = vsyncadd %s273, 0
          %s279 = smul.addr %s27, 32
          %s280 = smul.addr %s279, 4
          %s281 = scalar_lea.hbm %s0, %s280
          %s282 = sshll.u32 %s281, 4
          %s283 = int_to_ptr.hbm [resolvable:$true] %s282
          %s284 = sshll.u32 %s276, 4
          %s285 = int_to_ptr.vmem [resolvable:$true] %s284
          %290 = dma.hbm_to_vmem [thread:$0]  %s283, 2048, %s285, %s273, 64, 64, 4
        $region44: #{tpu_custom_call.1} parent=39 // pred_fallthru
          _
      $region40: #{tpu_custom_call.1} parent=5 // pred_fallthru
        _
      %p291 = scmp.le.s32.totalorder 1, %s20
      %p292 = scmp.lt.s32.totalorder %s20, 5
      %p293 = pnand %p291, %p292
      %p294 = pneg %p293
      // Predicated region
      $region45: #{tpu_custom_call.1} parent=5 // pred_check
        _
      $region46: #{tpu_custom_call.1} parent=5 // pred_check_branch
        %296 = sbr.rel (%p293) target = $region48
      $region47: #{tpu_custom_call.1} parent=5 // pred_region
        %s297 = ssub.s32 %s20, 1
        %s298 = sand.u32 %s45, 1
        %s299 = scalar_lea.sflag [#allocation5], %s298
        %s300 = sand.u32 %s45, 1
        %s301 = smul.addr %s300, 128
        %s302 = scalar_lea.vmem [#allocation4], %s301
        // Predicated region
        $region49: #{tpu_custom_call.1} parent=47 // pred_check
          %p303 = pneg %p58
        $region50: #{tpu_custom_call.1} parent=47 // pred_check_branch
          %305 = sbr.rel (%p303) target = $region52
        $region51: #{tpu_custom_call.1} parent=47 // pred_region
          %307 = dma.done %s299, 2048
        $region52: #{tpu_custom_call.1} parent=47 // pred_fallthru
          _
        // Predicated region
        $region53: #{tpu_custom_call.1} parent=47 // pred_check
          %p308 = pneg %p79
        $region54: #{tpu_custom_call.1} parent=47 // pred_check_branch
          %310 = sbr.rel (%p308) target = $region56
        $region55: #{tpu_custom_call.1} parent=47 // pred_region
          %312 = dma.done [#allocation8], 1024
        $region56: #{tpu_custom_call.1} parent=47 // pred_fallthru
          _
        // Predicated region
        $region57: #{tpu_custom_call.1} parent=47 // pred_check
          %p313 = pneg %p163
        $region58: #{tpu_custom_call.1} parent=47 // pred_check_branch
          %315 = sbr.rel (%p313) target = $region60
        $region59: #{tpu_custom_call.1} parent=47 // pred_region
          %317 = dma.done [#allocation8], 1024
        $region60: #{tpu_custom_call.1} parent=47 // pred_fallthru
          _
        %s318 = sand.u32 %s45, 1
        %s319 = scalar_lea.sflag [#allocation5], %s318
        %s320 = sand.u32 %s45, 1
        %s321 = smul.addr %s320, 128
        %s322 = scalar_lea.vmem [#allocation4], %s321
        %p323 = pneg %p58
        %p324 = pneg %p55
        %p325 = pneg %p79
        %p326 = pneg %p76
        %p327 = pneg %p100
        %p328 = pneg %p97
        %p329 = pneg %p121
        %p330 = pneg %p118
        %p331 = pneg %p142
        %p332 = pneg %p139
        %p333 = pneg %p163
        %p334 = pneg %p160
        %p335 = pneg %p184
        %p336 = pneg %p181
        %p337 = pneg %p210
        %p338 = pneg %p207
        %s339 = sand.u32 %s197, 1
        %s340 = scalar_lea.sflag [#allocation6], %s339
        %s341 = sand.u32 %s197, 1
        %s342 = smul.addr %s341, 128
        %s343 = scalar_lea.vmem [#allocation10], %s342
        %p345 = scmp.eq.s32.totalorder %s30, 0
        // Predicated region
        $region61: #{tpu_custom_call.1} parent=47 // pred_check
          %p346 = pneg %p345
        $region62: #{tpu_custom_call.1} parent=47 // pred_check_branch
          %348 = sbr.rel (%p346) target = $region64
        $region63: #{tpu_custom_call.1} parent=47 // pred_region
          %v349 = vld [vmem:[%s302] sm:$0xf]
          %v350 = vld [vmem:[%s302 + $0x4] sm:$0xf]
          %v351 = vld [vmem:[%s302 + $0x8] sm:$0xf]
          %v352 = vld [vmem:[%s302 + $0xc] sm:$0xf]
          %v353 = vld [vmem:[%s302 + $0x10] sm:$0xf]
          %v354 = vld [vmem:[%s302 + $0x14] sm:$0xf]
          %v355 = vld [vmem:[%s302 + $0x18] sm:$0xf]
          %v356 = vld [vmem:[%s302 + $0x1c] sm:$0xf]
          %v357 = vld [vmem:[%s302 + $0x20] sm:$0xf]
          %v358 = vld [vmem:[%s302 + $0x24] sm:$0xf]
          %v359 = vld [vmem:[%s302 + $0x28] sm:$0xf]
          %v360 = vld [vmem:[%s302 + $0x2c] sm:$0xf]
          %v361 = vld [vmem:[%s302 + $0x30] sm:$0xf]
          %v362 = vld [vmem:[%s302 + $0x34] sm:$0xf]
          %v363 = vld [vmem:[%s302 + $0x38] sm:$0xf]
          %v364 = vld [vmem:[%s302 + $0x3c] sm:$0xf]
          %v365 = vld [vmem:[%s302 + $0x40] sm:$0xf]
          %v366 = vld [vmem:[%s302 + $0x44] sm:$0xf]
          %v367 = vld [vmem:[%s302 + $0x48] sm:$0xf]
          %v368 = vld [vmem:[%s302 + $0x4c] sm:$0xf]
          %v369 = vld [vmem:[%s302 + $0x50] sm:$0xf]
          %v370 = vld [vmem:[%s302 + $0x54] sm:$0xf]
          %v371 = vld [vmem:[%s302 + $0x58] sm:$0xf]
          %v372 = vld [vmem:[%s302 + $0x5c] sm:$0xf]
          %v373 = vld [vmem:[%s302 + $0x60] sm:$0xf]
          %v374 = vld [vmem:[%s302 + $0x64] sm:$0xf]
          %v375 = vld [vmem:[%s302 + $0x68] sm:$0xf]
          %v376 = vld [vmem:[%s302 + $0x6c] sm:$0xf]
          %v377 = vld [vmem:[%s302 + $0x70] sm:$0xf]
          %v378 = vld [vmem:[%s302 + $0x74] sm:$0xf]
          %v379 = vld [vmem:[%s302 + $0x78] sm:$0xf]
          %v380 = vld [vmem:[%s302 + $0x7c] sm:$0xf]
          %v381 = vld [vmem:[#allocation7] sm:$0xf]
          %v382 = vld [vmem:[#allocation7 + $0x4] sm:$0xf]
          %v383 = vld [vmem:[#allocation7 + $0x8] sm:$0xf]
          %v384 = vld [vmem:[#allocation7 + $0xc] sm:$0xf]
          %v385 = vld [vmem:[#allocation7 + $0x10] sm:$0xf]
          %v386 = vld [vmem:[#allocation7 + $0x14] sm:$0xf]
          %v387 = vld [vmem:[#allocation7 + $0x18] sm:$0xf]
          %v388 = vld [vmem:[#allocation7 + $0x1c] sm:$0xf]
          %v389 = vld [vmem:[#allocation7 + $0x20] sm:$0xf]
          %v390 = vld [vmem:[#allocation7 + $0x24] sm:$0xf]
          %v391 = vld [vmem:[#allocation7 + $0x28] sm:$0xf]
          %v392 = vld [vmem:[#allocation7 + $0x2c] sm:$0xf]
          %v393 = vld [vmem:[#allocation7 + $0x30] sm:$0xf]
          %v394 = vld [vmem:[#allocation7 + $0x34] sm:$0xf]
          %v395 = vld [vmem:[#allocation7 + $0x38] sm:$0xf]
          %v396 = vld [vmem:[#allocation7 + $0x3c] sm:$0xf]
          %v397 = vld [vmem:[%s2] sm:$0xff]
          %v398 = vld [vmem:[%s2 + $0x8] sm:$0xff]
          %v399 = vld [vmem:[%s2 + $0x10] sm:$0xff]
          %v400 = vld [vmem:[%s2 + $0x18] sm:$0xff]
          %v401 = vld [vmem:[%s2 + $0x20] sm:$0xff]
          %v402 = vld [vmem:[%s2 + $0x28] sm:$0xff]
          %v403 = vld [vmem:[%s2 + $0x30] sm:$0xff]
          %v404 = vld [vmem:[%s2 + $0x38] sm:$0xff]
          %v405 = vld [vmem:[%s2 + $0x40] sm:$0xff]
          %v406 = vld [vmem:[%s2 + $0x48] sm:$0xff]
          %v407 = vld [vmem:[%s2 + $0x50] sm:$0xff]
          %v408 = vld [vmem:[%s2 + $0x58] sm:$0xff]
          %v409 = vld [vmem:[%s2 + $0x60] sm:$0xff]
          %v410 = vld [vmem:[%s2 + $0x68] sm:$0xff]
          %v411 = vld [vmem:[%s2 + $0x70] sm:$0xff]
          %v412 = vld [vmem:[%s2 + $0x78] sm:$0xff]
          %414 = vset.pattern.permute.xlu0 0
          %415 = vperm.xlu0 %414, %v397
          %v416 = vpop.permute.xlu0 %415
          %419 = vset.pattern.permute.xlu0 0
          %420 = vperm.xlu0 %419, %v398
          %v421 = vpop.permute.xlu0 %420
          %424 = vset.pattern.permute.xlu0 0
          %425 = vperm.xlu0 %424, %v399
          %v426 = vpop.permute.xlu0 %425
          %429 = vset.pattern.permute.xlu0 0
          %430 = vperm.xlu0 %429, %v400
          %v431 = vpop.permute.xlu0 %430
          %434 = vset.pattern.permute.xlu0 0
          %435 = vperm.xlu0 %434, %v401
          %v436 = vpop.permute.xlu0 %435
          %439 = vset.pattern.permute.xlu0 0
          %440 = vperm.xlu0 %439, %v402
          %v441 = vpop.permute.xlu0 %440
          %444 = vset.pattern.permute.xlu0 0
          %445 = vperm.xlu0 %444, %v403
          %v446 = vpop.permute.xlu0 %445
          %449 = vset.pattern.permute.xlu0 0
          %450 = vperm.xlu0 %449, %v404
          %v451 = vpop.permute.xlu0 %450
          %454 = vset.pattern.permute.xlu0 0
          %455 = vperm.xlu0 %454, %v405
          %v456 = vpop.permute.xlu0 %455
          %459 = vset.pattern.permute.xlu0 0
          %460 = vperm.xlu0 %459, %v406
          %v461 = vpop.permute.xlu0 %460
          %464 = vset.pattern.permute.xlu0 0
          %465 = vperm.xlu0 %464, %v407
          %v466 = vpop.permute.xlu0 %465
          %469 = vset.pattern.permute.xlu0 0
          %470 = vperm.xlu0 %469, %v408
          %v471 = vpop.permute.xlu0 %470
          %474 = vset.pattern.permute.xlu0 0
          %475 = vperm.xlu0 %474, %v409
          %v476 = vpop.permute.xlu0 %475
          %479 = vset.pattern.permute.xlu0 0
          %480 = vperm.xlu0 %479, %v410
          %v481 = vpop.permute.xlu0 %480
          %484 = vset.pattern.permute.xlu0 0
          %485 = vperm.xlu0 %484, %v411
          %v486 = vpop.permute.xlu0 %485
          %489 = vset.pattern.permute.xlu0 0
          %490 = vperm.xlu0 %489, %v412
          %v491 = vpop.permute.xlu0 %490
          %v509 = vunpack.c.l.b16 %v381
          %v510 = vunpack.c.l.b16 %v382
          %v511 = vunpack.c.l.b16 %v383
          %v512 = vunpack.c.l.b16 %v384
          %v513 = vunpack.c.l.b16 %v385
          %v514 = vunpack.c.l.b16 %v386
          %v515 = vunpack.c.l.b16 %v387
          %v516 = vunpack.c.l.b16 %v388
          %v517 = vunpack.c.l.b16 %v389
          %v518 = vunpack.c.l.b16 %v390
          %v519 = vunpack.c.l.b16 %v391
          %v520 = vunpack.c.l.b16 %v392
          %v521 = vunpack.c.l.b16 %v393
          %v522 = vunpack.c.l.b16 %v394
          %v523 = vunpack.c.l.b16 %v395
          %v524 = vunpack.c.l.b16 %v396
          %v525 = vpack.c.b16 %v510, %v509
          %v526 = vpack.c.b16 %v512, %v511
          %v527 = vpack.c.b16 %v514, %v513
          %v528 = vpack.c.b16 %v516, %v515
          %v529 = vpack.c.b16 %v518, %v517
          %v530 = vpack.c.b16 %v520, %v519
          %v531 = vpack.c.b16 %v522, %v521
          %v532 = vpack.c.b16 %v524, %v523
          %v573 = vunpack.c.l.b16 %v349
          %v574 = vunpack.c.l.b16 %v350
          %v575 = vunpack.c.l.b16 %v351
          %v576 = vunpack.c.l.b16 %v352
          %v577 = vunpack.c.l.b16 %v353
          %v578 = vunpack.c.l.b16 %v354
          %v579 = vunpack.c.l.b16 %v355
          %v580 = vunpack.c.l.b16 %v356
          %v581 = vunpack.c.l.b16 %v357
          %v582 = vunpack.c.l.b16 %v358
          %v583 = vunpack.c.l.b16 %v359
          %v584 = vunpack.c.l.b16 %v360
          %v585 = vunpack.c.l.b16 %v361
          %v586 = vunpack.c.l.b16 %v362
          %v587 = vunpack.c.l.b16 %v363
          %v588 = vunpack.c.l.b16 %v364
          %v589 = vunpack.c.l.b16 %v365
          %v590 = vunpack.c.l.b16 %v366
          %v591 = vunpack.c.l.b16 %v367
          %v592 = vunpack.c.l.b16 %v368
          %v593 = vunpack.c.l.b16 %v369
          %v594 = vunpack.c.l.b16 %v370
          %v595 = vunpack.c.l.b16 %v371
          %v596 = vunpack.c.l.b16 %v372
          %v597 = vunpack.c.l.b16 %v373
          %v598 = vunpack.c.l.b16 %v374
          %v599 = vunpack.c.l.b16 %v375
          %v600 = vunpack.c.l.b16 %v376
          %v601 = vunpack.c.l.b16 %v377
          %v602 = vunpack.c.l.b16 %v378
          %v603 = vunpack.c.l.b16 %v379
          %v604 = vunpack.c.l.b16 %v380
          %v605 = vpack.c.b16 %v574, %v573
          %v606 = vpack.c.b16 %v576, %v575
          %v607 = vpack.c.b16 %v578, %v577
          %v608 = vpack.c.b16 %v580, %v579
          %v609 = vpack.c.b16 %v582, %v581
          %v610 = vpack.c.b16 %v584, %v583
          %v611 = vpack.c.b16 %v586, %v585
          %v612 = vpack.c.b16 %v588, %v587
          %v613 = vpack.c.b16 %v590, %v589
          %v614 = vpack.c.b16 %v592, %v591
          %v615 = vpack.c.b16 %v594, %v593
          %v616 = vpack.c.b16 %v596, %v595
          %v617 = vpack.c.b16 %v598, %v597
          %v618 = vpack.c.b16 %v600, %v599
          %v619 = vpack.c.b16 %v602, %v601
          %v620 = vpack.c.b16 %v604, %v603
          %637 = vmatpush.bf16.xpose.msra.mxu0 %v612
          %638 = vmatpush.bf16.xpose.msra.mxu0 %v611
          %639 = vmatpush.bf16.xpose.msra.mxu0 %v610
          %640 = vmatpush.bf16.xpose.msra.mxu0 %v609
          %641 = vmatpush.bf16.xpose.msra.mxu0 %v608
          %642 = vmatpush.bf16.xpose.msra.mxu0 %v607
          %643 = vmatpush.bf16.xpose.msra.mxu0 %v606
          %644 = vmatpush.bf16.xpose.msra.mxu0 %v605
          %645 = vmatmul.bf16.gmra.mxu0 %v525
          %v646 = vpop.f32.mrf.mxu0
          %v647 = vadd.f32 %v416, %v646
          %v648 = vpop.f32.mrf.mxu0
          %v649 = vadd.f32 %v421, %v648
          %650 = vmatmul.bf16.gmra.mxu0 %v526
          %v651 = vpop.f32.mrf.mxu0
          %v652 = vadd.f32 %v426, %v651
          %v653 = vpop.f32.mrf.mxu0
          %v654 = vadd.f32 %v431, %v653
          %655 = vmatmul.bf16.gmra.mxu0 %v527
          %v656 = vpop.f32.mrf.mxu0
          %v657 = vadd.f32 %v436, %v656
          %v658 = vpop.f32.mrf.mxu0
          %v659 = vadd.f32 %v441, %v658
          %660 = vmatmul.bf16.gmra.mxu0 %v528
          %v661 = vpop.f32.mrf.mxu0
          %v662 = vadd.f32 %v446, %v661
          %v663 = vpop.f32.mrf.mxu0
          %v664 = vadd.f32 %v451, %v663
          %665 = vmatmul.bf16.gmra.mxu0 %v529
          %v666 = vpop.f32.mrf.mxu0
          %v667 = vadd.f32 %v456, %v666
          %v668 = vpop.f32.mrf.mxu0
          %v669 = vadd.f32 %v461, %v668
          %670 = vmatmul.bf16.gmra.mxu0 %v530
          %v671 = vpop.f32.mrf.mxu0
          %v672 = vadd.f32 %v466, %v671
          %v673 = vpop.f32.mrf.mxu0
          %v674 = vadd.f32 %v471, %v673
          %675 = vmatmul.bf16.gmra.mxu0 %v531
          %v676 = vpop.f32.mrf.mxu0
          %v677 = vadd.f32 %v476, %v676
          %v678 = vpop.f32.mrf.mxu0
          %v679 = vadd.f32 %v481, %v678
          %680 = vmatmul.bf16.gmra.mxu0 %v532
          %v681 = vpop.f32.mrf.mxu0
          %v682 = vadd.f32 %v486, %v681
          %v683 = vpop.f32.mrf.mxu0
          %v684 = vadd.f32 %v491, %v683
          %685 = vdwg.mxu0
          %686 = vmatpush.bf16.xpose.msra.mxu0 %v620
          %687 = vmatpush.bf16.xpose.msra.mxu0 %v619
          %688 = vmatpush.bf16.xpose.msra.mxu0 %v618
          %689 = vmatpush.bf16.xpose.msra.mxu0 %v617
          %690 = vmatpush.bf16.xpose.msra.mxu0 %v616
          %691 = vmatpush.bf16.xpose.msra.mxu0 %v615
          %692 = vmatpush.bf16.xpose.msra.mxu0 %v614
          %693 = vmatpush.bf16.xpose.msra.mxu0 %v613
          %694 = vmatmul.bf16.gmra.mxu0 %v525
          %v695 = vpop.f32.mrf.mxu0
          %v696 = vadd.f32 %v416, %v695
          %v697 = vpop.f32.mrf.mxu0
          %v698 = vadd.f32 %v421, %v697
          %699 = vmatmul.bf16.gmra.mxu0 %v526
          %v700 = vpop.f32.mrf.mxu0
          %v701 = vadd.f32 %v426, %v700
          %v702 = vpop.f32.mrf.mxu0
          %v703 = vadd.f32 %v431, %v702
          %704 = vmatmul.bf16.gmra.mxu0 %v527
          %v705 = vpop.f32.mrf.mxu0
          %v706 = vadd.f32 %v436, %v705
          %v707 = vpop.f32.mrf.mxu0
          %v708 = vadd.f32 %v441, %v707
          %709 = vmatmul.bf16.gmra.mxu0 %v528
          %v710 = vpop.f32.mrf.mxu0
          %v711 = vadd.f32 %v446, %v710
          %v712 = vpop.f32.mrf.mxu0
          %v713 = vadd.f32 %v451, %v712
          %714 = vmatmul.bf16.gmra.mxu0 %v529
          %v715 = vpop.f32.mrf.mxu0
          %v716 = vadd.f32 %v456, %v715
          %v717 = vpop.f32.mrf.mxu0
          %v718 = vadd.f32 %v461, %v717
          %719 = vmatmul.bf16.gmra.mxu0 %v530
          %v720 = vpop.f32.mrf.mxu0
          %v721 = vadd.f32 %v466, %v720
          %v722 = vpop.f32.mrf.mxu0
          %v723 = vadd.f32 %v471, %v722
          %724 = vmatmul.bf16.gmra.mxu0 %v531
          %v725 = vpop.f32.mrf.mxu0
          %v726 = vadd.f32 %v476, %v725
          %v727 = vpop.f32.mrf.mxu0
          %v728 = vadd.f32 %v481, %v727
          %729 = vmatmul.bf16.gmra.mxu0 %v532
          %v730 = vpop.f32.mrf.mxu0
          %v731 = vadd.f32 %v486, %v730
          %v732 = vpop.f32.mrf.mxu0
          %v733 = vadd.f32 %v491, %v732
          %734 = vdwg.mxu0
          %v735 = vpack.c.bf16 %v696, %v647
          %v736 = vpack.c.bf16 %v698, %v649
          %v737 = vpack.c.bf16 %v701, %v652
          %v738 = vpack.c.bf16 %v703, %v654
          %v739 = vpack.c.bf16 %v706, %v657
          %v740 = vpack.c.bf16 %v708, %v659
          %v741 = vpack.c.bf16 %v711, %v662
          %v742 = vpack.c.bf16 %v713, %v664
          %v743 = vpack.c.bf16 %v716, %v667
          %v744 = vpack.c.bf16 %v718, %v669
          %v745 = vpack.c.bf16 %v721, %v672
          %v746 = vpack.c.bf16 %v723, %v674
          %v747 = vpack.c.bf16 %v726, %v677
          %v748 = vpack.c.bf16 %v728, %v679
          %v749 = vpack.c.bf16 %v731, %v682
          %v750 = vpack.c.bf16 %v733, %v684
          %751 = vst [vmem:[#allocation2] sm:$0xff] %v735
          %752 = vst [vmem:[#allocation2 + $0x8] sm:$0xff] %v736
          %753 = vst [vmem:[#allocation2 + $0x10] sm:$0xff] %v737
          %754 = vst [vmem:[#allocation2 + $0x18] sm:$0xff] %v738
          %755 = vst [vmem:[#allocation2 + $0x20] sm:$0xff] %v739
          %756 = vst [vmem:[#allocation2 + $0x28] sm:$0xff] %v740
          %757 = vst [vmem:[#allocation2 + $0x30] sm:$0xff] %v741
          %758 = vst [vmem:[#allocation2 + $0x38] sm:$0xff] %v742
          %759 = vst [vmem:[#allocation2 + $0x40] sm:$0xff] %v743
          %760 = vst [vmem:[#allocation2 + $0x48] sm:$0xff] %v744
          %761 = vst [vmem:[#allocation2 + $0x50] sm:$0xff] %v745
          %762 = vst [vmem:[#allocation2 + $0x58] sm:$0xff] %v746
          %763 = vst [vmem:[#allocation2 + $0x60] sm:$0xff] %v747
          %764 = vst [vmem:[#allocation2 + $0x68] sm:$0xff] %v748
          %765 = vst [vmem:[#allocation2 + $0x70] sm:$0xff] %v749
          %766 = vst [vmem:[#allocation2 + $0x78] sm:$0xff] %v750
          %767 = vst [vmem:[#allocation3] sm:$0xff] 0.0
          %768 = vst [vmem:[#allocation3 + $0x8] sm:$0xff] 0.0
          %769 = vst [vmem:[#allocation3 + $0x10] sm:$0xff] 0.0
          %770 = vst [vmem:[#allocation3 + $0x18] sm:$0xff] 0.0
          %771 = vst [vmem:[#allocation3 + $0x20] sm:$0xff] 0.0
          %772 = vst [vmem:[#allocation3 + $0x28] sm:$0xff] 0.0
          %773 = vst [vmem:[#allocation3 + $0x30] sm:$0xff] 0.0
          %774 = vst [vmem:[#allocation3 + $0x38] sm:$0xff] 0.0
          %775 = vst [vmem:[#allocation3 + $0x40] sm:$0xff] 0.0
          %776 = vst [vmem:[#allocation3 + $0x48] sm:$0xff] 0.0
          %777 = vst [vmem:[#allocation3 + $0x50] sm:$0xff] 0.0
          %778 = vst [vmem:[#allocation3 + $0x58] sm:$0xff] 0.0
          %779 = vst [vmem:[#allocation3 + $0x60] sm:$0xff] 0.0
          %780 = vst [vmem:[#allocation3 + $0x68] sm:$0xff] 0.0
          %781 = vst [vmem:[#allocation3 + $0x70] sm:$0xff] 0.0
          %782 = vst [vmem:[#allocation3 + $0x78] sm:$0xff] 0.0
          %783 = vst [vmem:[#allocation3 + $0x80] sm:$0xff] 0.0
          %784 = vst [vmem:[#allocation3 + $0x88] sm:$0xff] 0.0
          %785 = vst [vmem:[#allocation3 + $0x90] sm:$0xff] 0.0
          %786 = vst [vmem:[#allocation3 + $0x98] sm:$0xff] 0.0
          %787 = vst [vmem:[#allocation3 + $0xa0] sm:$0xff] 0.0
          %788 = vst [vmem:[#allocation3 + $0xa8] sm:$0xff] 0.0
          %789 = vst [vmem:[#allocation3 + $0xb0] sm:$0xff] 0.0
          %790 = vst [vmem:[#allocation3 + $0xb8] sm:$0xff] 0.0
          %791 = vst [vmem:[#allocation3 + $0xc0] sm:$0xff] 0.0
          %792 = vst [vmem:[#allocation3 + $0xc8] sm:$0xff] 0.0
          %793 = vst [vmem:[#allocation3 + $0xd0] sm:$0xff] 0.0
          %794 = vst [vmem:[#allocation3 + $0xd8] sm:$0xff] 0.0
          %795 = vst [vmem:[#allocation3 + $0xe0] sm:$0xff] 0.0
          %796 = vst [vmem:[#allocation3 + $0xe8] sm:$0xff] 0.0
          %797 = vst [vmem:[#allocation3 + $0xf0] sm:$0xff] 0.0
          %798 = vst [vmem:[#allocation3 + $0xf8] sm:$0xff] 0.0
        $region64: #{tpu_custom_call.1} parent=47 // pred_fallthru
          _
        %s799 = smul.u32 %s30, 128
        %s800 = sshra.s32 %s799, 3
        %s801 = sand.u32 %s799, 7
        %s802 = smul.addr %s800, 4
        %s803 = scalar_lea.vmem %s302, %s802 [#allocation4]
        %v804 = vld [vmem:[%s803] sm:$0xf]
        %v805 = vld [vmem:[%s803 + $0x4] sm:$0xf]
        %v806 = vld [vmem:[%s803 + $0x8] sm:$0xf]
        %v807 = vld [vmem:[%s803 + $0xc] sm:$0xf]
        %v808 = vld [vmem:[%s803 + $0x10] sm:$0xf]
        %v809 = vld [vmem:[%s803 + $0x14] sm:$0xf]
        %v810 = vld [vmem:[%s803 + $0x18] sm:$0xf]
        %v811 = vld [vmem:[%s803 + $0x1c] sm:$0xf]
        %v812 = vld [vmem:[%s803 + $0x20] sm:$0xf]
        %v813 = vld [vmem:[%s803 + $0x24] sm:$0xf]
        %v814 = vld [vmem:[%s803 + $0x28] sm:$0xf]
        %v815 = vld [vmem:[%s803 + $0x2c] sm:$0xf]
        %v816 = vld [vmem:[%s803 + $0x30] sm:$0xf]
        %v817 = vld [vmem:[%s803 + $0x34] sm:$0xf]
        %v818 = vld [vmem:[%s803 + $0x38] sm:$0xf]
        %v819 = vld [vmem:[%s803 + $0x3c] sm:$0xf]
        %v820 = vld [vmem:[%s3] sm:$0xff]
        %v821 = vld [vmem:[%s3 + $0x8] sm:$0xff]
        %v822 = vld [vmem:[%s3 + $0x10] sm:$0xff]
        %v823 = vld [vmem:[%s3 + $0x18] sm:$0xff]
        %v824 = vld [vmem:[%s3 + $0x20] sm:$0xff]
        %v825 = vld [vmem:[%s3 + $0x28] sm:$0xff]
        %v826 = vld [vmem:[%s3 + $0x30] sm:$0xff]
        %v827 = vld [vmem:[%s3 + $0x38] sm:$0xff]
        %v828 = vld [vmem:[%s3 + $0x40] sm:$0xff]
        %v829 = vld [vmem:[%s3 + $0x48] sm:$0xff]
        %v830 = vld [vmem:[%s3 + $0x50] sm:$0xff]
        %v831 = vld [vmem:[%s3 + $0x58] sm:$0xff]
        %v832 = vld [vmem:[%s3 + $0x60] sm:$0xff]
        %v833 = vld [vmem:[%s3 + $0x68] sm:$0xff]
        %v834 = vld [vmem:[%s3 + $0x70] sm:$0xff]
        %v835 = vld [vmem:[%s3 + $0x78] sm:$0xff]
        %v836 = vld [vmem:[%s4] sm:$0x3]
        %v838 = vperm.slane %v836, 0
        %v839 = vperm.slane %v836, 1
        %v858 = vunpack.c.l.b16 %v804
        %v859 = vunpack.c.l.b16 %v805
        %v860 = vunpack.c.l.b16 %v806
        %v861 = vunpack.c.l.b16 %v807
        %v862 = vunpack.c.l.b16 %v808
        %v863 = vunpack.c.l.b16 %v809
        %v864 = vunpack.c.l.b16 %v810
        %v865 = vunpack.c.l.b16 %v811
        %v866 = vunpack.c.l.b16 %v812
        %v867 = vunpack.c.l.b16 %v813
        %v868 = vunpack.c.l.b16 %v814
        %v869 = vunpack.c.l.b16 %v815
        %v870 = vunpack.c.l.b16 %v816
        %v871 = vunpack.c.l.b16 %v817
        %v872 = vunpack.c.l.b16 %v818
        %v873 = vunpack.c.l.b16 %v819
        %v874 = vpack.c.b16 %v859, %v858
        %v875 = vpack.c.b16 %v861, %v860
        %v876 = vpack.c.b16 %v863, %v862
        %v877 = vpack.c.b16 %v865, %v864
        %v878 = vpack.c.b16 %v867, %v866
        %v879 = vpack.c.b16 %v869, %v868
        %v880 = vpack.c.b16 %v871, %v870
        %v881 = vpack.c.b16 %v873, %v872
        %v906 = vunpack.c.l.b16 %v820
        %v907 = vunpack.c.h.b16 %v820
        %v908 = vunpack.c.l.b16 %v821
        %v909 = vunpack.c.h.b16 %v821
        %v910 = vunpack.c.l.b16 %v822
        %v911 = vunpack.c.h.b16 %v822
        %v912 = vunpack.c.l.b16 %v823
        %v913 = vunpack.c.h.b16 %v823
        %v914 = vunpack.c.l.b16 %v824
        %v915 = vunpack.c.h.b16 %v824
        %v916 = vunpack.c.l.b16 %v825
        %v917 = vunpack.c.h.b16 %v825
        %v918 = vunpack.c.l.b16 %v826
        %v919 = vunpack.c.h.b16 %v826
        %v920 = vunpack.c.l.b16 %v827
        %v921 = vunpack.c.h.b16 %v827
        %v922 = vunpack.c.l.b16 %v828
        %v923 = vunpack.c.h.b16 %v828
        %v924 = vunpack.c.l.b16 %v829
        %v925 = vunpack.c.h.b16 %v829
        %v926 = vunpack.c.l.b16 %v830
        %v927 = vunpack.c.h.b16 %v830
        %v928 = vunpack.c.l.b16 %v831
        %v929 = vunpack.c.h.b16 %v831
        %v930 = vunpack.c.l.b16 %v832
        %v931 = vunpack.c.h.b16 %v832
        %v932 = vunpack.c.l.b16 %v833
        %v933 = vunpack.c.h.b16 %v833
        %v934 = vunpack.c.l.b16 %v834
        %v935 = vunpack.c.h.b16 %v834
        %v936 = vunpack.c.l.b16 %v835
        %v937 = vunpack.c.h.b16 %v835
        %v938 = vpack.c.b16 %v908, %v906
        %v939 = vpack.c.b16 %v909, %v907
        %v940 = vpack.c.b16 %v912, %v910
        %v941 = vpack.c.b16 %v913, %v911
        %v942 = vpack.c.b16 %v916, %v914
        %v943 = vpack.c.b16 %v917, %v915
        %v944 = vpack.c.b16 %v920, %v918
        %v945 = vpack.c.b16 %v921, %v919
        %v946 = vpack.c.b16 %v924, %v922
        %v947 = vpack.c.b16 %v925, %v923
        %v948 = vpack.c.b16 %v928, %v926
        %v949 = vpack.c.b16 %v929, %v927
        %v950 = vpack.c.b16 %v932, %v930
        %v951 = vpack.c.b16 %v933, %v931
        %v952 = vpack.c.b16 %v936, %v934
        %v953 = vpack.c.b16 %v937, %v935
        %970 = vmatpush.bf16.msra.mxu0 %v952
        %971 = vmatpush.bf16.msra.mxu0 %v950
        %972 = vmatpush.bf16.msra.mxu0 %v948
        %973 = vmatpush.bf16.msra.mxu0 %v946
        %974 = vmatpush.bf16.msra.mxu0 %v944
        %975 = vmatpush.bf16.msra.mxu0 %v942
        %976 = vmatpush.bf16.msra.mxu0 %v940
        %977 = vmatpush.bf16.msra.mxu0 %v938
        %978 = vmatmul.bf16.gmra.mxu0 %v874
        %v979 = vpop.f32.mrf.mxu0
        %v980 = vadd.f32 %v838, %v979
        %v981 = vpop.f32.mrf.mxu0
        %v982 = vadd.f32 %v838, %v981
        %983 = vmatmul.bf16.gmra.mxu0 %v875
        %v984 = vpop.f32.mrf.mxu0
        %v985 = vadd.f32 %v838, %v984
        %v986 = vpop.f32.mrf.mxu0
        %v987 = vadd.f32 %v838, %v986
        %988 = vmatmul.bf16.gmra.mxu0 %v876
        %v989 = vpop.f32.mrf.mxu0
        %v990 = vadd.f32 %v838, %v989
        %v991 = vpop.f32.mrf.mxu0
        %v992 = vadd.f32 %v838, %v991
        %993 = vmatmul.bf16.gmra.mxu0 %v877
        %v994 = vpop.f32.mrf.mxu0
        %v995 = vadd.f32 %v838, %v994
        %v996 = vpop.f32.mrf.mxu0
        %v997 = vadd.f32 %v838, %v996
        %998 = vmatmul.bf16.gmra.mxu0 %v878
        %v999 = vpop.f32.mrf.mxu0
        %v1000 = vadd.f32 %v838, %v999
        %v1001 = vpop.f32.mrf.mxu0
        %v1002 = vadd.f32 %v838, %v1001
        %1003 = vmatmul.bf16.gmra.mxu0 %v879
        %v1004 = vpop.f32.mrf.mxu0
        %v1005 = vadd.f32 %v838, %v1004
        %v1006 = vpop.f32.mrf.mxu0
        %v1007 = vadd.f32 %v838, %v1006
        %1008 = vmatmul.bf16.gmra.mxu0 %v880
        %v1009 = vpop.f32.mrf.mxu0
        %v1010 = vadd.f32 %v838, %v1009
        %v1011 = vpop.f32.mrf.mxu0
        %v1012 = vadd.f32 %v838, %v1011
        %1013 = vmatmul.bf16.gmra.mxu0 %v881
        %v1014 = vpop.f32.mrf.mxu0
        %v1015 = vadd.f32 %v838, %v1014
        %v1016 = vpop.f32.mrf.mxu0
        %v1017 = vadd.f32 %v838, %v1016
        %1018 = vdwg.mxu0
        %1019 = vmatpush.bf16.msra.mxu0 %v953
        %1020 = vmatpush.bf16.msra.mxu0 %v951
        %1021 = vmatpush.bf16.msra.mxu0 %v949
        %1022 = vmatpush.bf16.msra.mxu0 %v947
        %1023 = vmatpush.bf16.msra.mxu0 %v945
        %1024 = vmatpush.bf16.msra.mxu0 %v943
        %1025 = vmatpush.bf16.msra.mxu0 %v941
        %1026 = vmatpush.bf16.msra.mxu0 %v939
        %1027 = vmatmul.bf16.gmra.mxu0 %v874
        %v1028 = vpop.f32.mrf.mxu0
        %v1029 = vadd.f32 %v839, %v1028
        %v1030 = vpop.f32.mrf.mxu0
        %v1031 = vadd.f32 %v839, %v1030
        %1032 = vmatmul.bf16.gmra.mxu0 %v875
        %v1033 = vpop.f32.mrf.mxu0
        %v1034 = vadd.f32 %v839, %v1033
        %v1035 = vpop.f32.mrf.mxu0
        %v1036 = vadd.f32 %v839, %v1035
        %1037 = vmatmul.bf16.gmra.mxu0 %v876
        %v1038 = vpop.f32.mrf.mxu0
        %v1039 = vadd.f32 %v839, %v1038
        %v1040 = vpop.f32.mrf.mxu0
        %v1041 = vadd.f32 %v839, %v1040
        %1042 = vmatmul.bf16.gmra.mxu0 %v877
        %v1043 = vpop.f32.mrf.mxu0
        %v1044 = vadd.f32 %v839, %v1043
        %v1045 = vpop.f32.mrf.mxu0
        %v1046 = vadd.f32 %v839, %v1045
        %1047 = vmatmul.bf16.gmra.mxu0 %v878
        %v1048 = vpop.f32.mrf.mxu0
        %v1049 = vadd.f32 %v839, %v1048
        %v1050 = vpop.f32.mrf.mxu0
        %v1051 = vadd.f32 %v839, %v1050
        %1052 = vmatmul.bf16.gmra.mxu0 %v879
        %v1053 = vpop.f32.mrf.mxu0
        %v1054 = vadd.f32 %v839, %v1053
        %v1055 = vpop.f32.mrf.mxu0
        %v1056 = vadd.f32 %v839, %v1055
        %1057 = vmatmul.bf16.gmra.mxu0 %v880
        %v1058 = vpop.f32.mrf.mxu0
        %v1059 = vadd.f32 %v839, %v1058
        %v1060 = vpop.f32.mrf.mxu0
        %v1061 = vadd.f32 %v839, %v1060
        %1062 = vmatmul.bf16.gmra.mxu0 %v881
        %v1063 = vpop.f32.mrf.mxu0
        %v1064 = vadd.f32 %v839, %v1063
        %v1065 = vpop.f32.mrf.mxu0
        %v1066 = vadd.f32 %v839, %v1065
        %1067 = vdwg.mxu0
        %v1068 = vpack.c.bf16 %v982, %v980
        %v1069 = vpack.c.bf16 %v987, %v985
        %v1070 = vpack.c.bf16 %v992, %v990
        %v1071 = vpack.c.bf16 %v997, %v995
        %v1072 = vpack.c.bf16 %v1002, %v1000
        %v1073 = vpack.c.bf16 %v1007, %v1005
        %v1074 = vpack.c.bf16 %v1012, %v1010
        %v1075 = vpack.c.bf16 %v1017, %v1015
        %v1076 = vld [vmem:[#allocation2] sm:$0xff]
        %v1077 = vld [vmem:[#allocation2 + $0x8] sm:$0xff]
        %v1078 = vld [vmem:[#allocation2 + $0x10] sm:$0xff]
        %v1079 = vld [vmem:[#allocation2 + $0x18] sm:$0xff]
        %v1080 = vld [vmem:[#allocation2 + $0x20] sm:$0xff]
        %v1081 = vld [vmem:[#allocation2 + $0x28] sm:$0xff]
        %v1082 = vld [vmem:[#allocation2 + $0x30] sm:$0xff]
        %v1083 = vld [vmem:[#allocation2 + $0x38] sm:$0xff]
        %v1084 = vld [vmem:[#allocation2 + $0x40] sm:$0xff]
        %v1085 = vld [vmem:[#allocation2 + $0x48] sm:$0xff]
        %v1086 = vld [vmem:[#allocation2 + $0x50] sm:$0xff]
        %v1087 = vld [vmem:[#allocation2 + $0x58] sm:$0xff]
        %v1088 = vld [vmem:[#allocation2 + $0x60] sm:$0xff]
        %v1089 = vld [vmem:[#allocation2 + $0x68] sm:$0xff]
        %v1090 = vld [vmem:[#allocation2 + $0x70] sm:$0xff]
        %v1091 = vld [vmem:[#allocation2 + $0x78] sm:$0xff]
        %v1108 = vunpack.c.l.b16 %v1076
        %v1109 = vunpack.c.h.b16 %v1076
        %v1110 = vunpack.c.l.b16 %v1077
        %v1111 = vunpack.c.h.b16 %v1077
        %v1112 = vunpack.c.l.b16 %v1078
        %v1113 = vunpack.c.h.b16 %v1078
        %v1114 = vunpack.c.l.b16 %v1079
        %v1115 = vunpack.c.h.b16 %v1079
        %v1116 = vunpack.c.l.b16 %v1080
        %v1117 = vunpack.c.h.b16 %v1080
        %v1118 = vunpack.c.l.b16 %v1081
        %v1119 = vunpack.c.h.b16 %v1081
        %v1120 = vunpack.c.l.b16 %v1082
        %v1121 = vunpack.c.h.b16 %v1082
        %v1122 = vunpack.c.l.b16 %v1083
        %v1123 = vunpack.c.h.b16 %v1083
        %v1124 = vunpack.c.l.b16 %v1084
        %v1125 = vunpack.c.h.b16 %v1084
        %v1126 = vunpack.c.l.b16 %v1085
        %v1127 = vunpack.c.h.b16 %v1085
        %v1128 = vunpack.c.l.b16 %v1086
        %v1129 = vunpack.c.h.b16 %v1086
        %v1130 = vunpack.c.l.b16 %v1087
        %v1131 = vunpack.c.h.b16 %v1087
        %v1132 = vunpack.c.l.b16 %v1088
        %v1133 = vunpack.c.h.b16 %v1088
        %v1134 = vunpack.c.l.b16 %v1089
        %v1135 = vunpack.c.h.b16 %v1089
        %v1136 = vunpack.c.l.b16 %v1090
        %v1137 = vunpack.c.h.b16 %v1090
        %v1138 = vunpack.c.l.b16 %v1091
        %v1139 = vunpack.c.h.b16 %v1091
        %v1140 = vpack.c.b16 %v1110, %v1108
        %v1141 = vpack.c.b16 %v1111, %v1109
        %v1142 = vpack.c.b16 %v1114, %v1112
        %v1143 = vpack.c.b16 %v1115, %v1113
        %v1144 = vpack.c.b16 %v1118, %v1116
        %v1145 = vpack.c.b16 %v1119, %v1117
        %v1146 = vpack.c.b16 %v1122, %v1120
        %v1147 = vpack.c.b16 %v1123, %v1121
        %v1148 = vpack.c.b16 %v1126, %v1124
        %v1149 = vpack.c.b16 %v1127, %v1125
        %v1150 = vpack.c.b16 %v1130, %v1128
        %v1151 = vpack.c.b16 %v1131, %v1129
        %v1152 = vpack.c.b16 %v1134, %v1132
        %v1153 = vpack.c.b16 %v1135, %v1133
        %v1154 = vpack.c.b16 %v1138, %v1136
        %v1155 = vpack.c.b16 %v1139, %v1137
        %1172 = vmatpush.bf16.msra.mxu0 %v1154
        %1173 = vmatpush.bf16.msra.mxu0 %v1152
        %1174 = vmatpush.bf16.msra.mxu0 %v1150
        %1175 = vmatpush.bf16.msra.mxu0 %v1148
        %1176 = vmatpush.bf16.msra.mxu0 %v1146
        %1177 = vmatpush.bf16.msra.mxu0 %v1144
        %1178 = vmatpush.bf16.msra.mxu0 %v1142
        %1179 = vmatpush.bf16.msra.mxu0 %v1140
        %1180 = vmatmul.bf16.gmra.mxu0 %v1068
        %v1181 = vpop.f32.mrf.mxu0
        %v1182 = vadd.f32 0.0, %v1181
        %v1183 = vpop.f32.mrf.mxu0
        %v1184 = vadd.f32 0.0, %v1183
        %1185 = vmatmul.bf16.gmra.mxu0 %v1069
        %v1186 = vpop.f32.mrf.mxu0
        %v1187 = vadd.f32 0.0, %v1186
        %v1188 = vpop.f32.mrf.mxu0
        %v1189 = vadd.f32 0.0, %v1188
        %1190 = vmatmul.bf16.gmra.mxu0 %v1070
        %v1191 = vpop.f32.mrf.mxu0
        %v1192 = vadd.f32 0.0, %v1191
        %v1193 = vpop.f32.mrf.mxu0
        %v1194 = vadd.f32 0.0, %v1193
        %1195 = vmatmul.bf16.gmra.mxu0 %v1071
        %v1196 = vpop.f32.mrf.mxu0
        %v1197 = vadd.f32 0.0, %v1196
        %v1198 = vpop.f32.mrf.mxu0
        %v1199 = vadd.f32 0.0, %v1198
        %1200 = vmatmul.bf16.gmra.mxu0 %v1072
        %v1201 = vpop.f32.mrf.mxu0
        %v1202 = vadd.f32 0.0, %v1201
        %v1203 = vpop.f32.mrf.mxu0
        %v1204 = vadd.f32 0.0, %v1203
        %1205 = vmatmul.bf16.gmra.mxu0 %v1073
        %v1206 = vpop.f32.mrf.mxu0
        %v1207 = vadd.f32 0.0, %v1206
        %v1208 = vpop.f32.mrf.mxu0
        %v1209 = vadd.f32 0.0, %v1208
        %1210 = vmatmul.bf16.gmra.mxu0 %v1074
        %v1211 = vpop.f32.mrf.mxu0
        %v1212 = vadd.f32 0.0, %v1211
        %v1213 = vpop.f32.mrf.mxu0
        %v1214 = vadd.f32 0.0, %v1213
        %1215 = vmatmul.bf16.gmra.mxu0 %v1075
        %v1216 = vpop.f32.mrf.mxu0
        %v1217 = vadd.f32 0.0, %v1216
        %v1218 = vpop.f32.mrf.mxu0
        %v1219 = vadd.f32 0.0, %v1218
        %1220 = vdwg.mxu0
        %1221 = vmatpush.bf16.msra.mxu0 %v1155
        %1222 = vmatpush.bf16.msra.mxu0 %v1153
        %1223 = vmatpush.bf16.msra.mxu0 %v1151
        %1224 = vmatpush.bf16.msra.mxu0 %v1149
        %1225 = vmatpush.bf16.msra.mxu0 %v1147
        %1226 = vmatpush.bf16.msra.mxu0 %v1145
        %1227 = vmatpush.bf16.msra.mxu0 %v1143
        %1228 = vmatpush.bf16.msra.mxu0 %v1141
        %1229 = vmatmul.bf16.gmra.mxu0 %v1068
        %v1230 = vpop.f32.mrf.mxu0
        %v1231 = vadd.f32 0.0, %v1230
        %v1232 = vpop.f32.mrf.mxu0
        %v1233 = vadd.f32 0.0, %v1232
        %1234 = vmatmul.bf16.gmra.mxu0 %v1069
        %v1235 = vpop.f32.mrf.mxu0
        %v1236 = vadd.f32 0.0, %v1235
        %v1237 = vpop.f32.mrf.mxu0
        %v1238 = vadd.f32 0.0, %v1237
        %1239 = vmatmul.bf16.gmra.mxu0 %v1070
        %v1240 = vpop.f32.mrf.mxu0
        %v1241 = vadd.f32 0.0, %v1240
        %v1242 = vpop.f32.mrf.mxu0
        %v1243 = vadd.f32 0.0, %v1242
        %1244 = vmatmul.bf16.gmra.mxu0 %v1071
        %v1245 = vpop.f32.mrf.mxu0
        %v1246 = vadd.f32 0.0, %v1245
        %v1247 = vpop.f32.mrf.mxu0
        %v1248 = vadd.f32 0.0, %v1247
        %1249 = vmatmul.bf16.gmra.mxu0 %v1072
        %v1250 = vpop.f32.mrf.mxu0
        %v1251 = vadd.f32 0.0, %v1250
        %v1252 = vpop.f32.mrf.mxu0
        %v1253 = vadd.f32 0.0, %v1252
        %1254 = vmatmul.bf16.gmra.mxu0 %v1073
        %v1255 = vpop.f32.mrf.mxu0
        %v1256 = vadd.f32 0.0, %v1255
        %v1257 = vpop.f32.mrf.mxu0
        %v1258 = vadd.f32 0.0, %v1257
        %1259 = vmatmul.bf16.gmra.mxu0 %v1074
        %v1260 = vpop.f32.mrf.mxu0
        %v1261 = vadd.f32 0.0, %v1260
        %v1262 = vpop.f32.mrf.mxu0
        %v1263 = vadd.f32 0.0, %v1262
        %1264 = vmatmul.bf16.gmra.mxu0 %v1075
        %v1265 = vpop.f32.mrf.mxu0
        %v1266 = vadd.f32 0.0, %v1265
        %v1267 = vpop.f32.mrf.mxu0
        %v1268 = vadd.f32 0.0, %v1267
        %1269 = vdwg.mxu0
        %v1270 = vmax.f32 %v1182, %v1231
        %1271 = vmax.xlane.f32.xlu0 %v1270
        %v1272 = vpop.xlane.xlu0 %1271
        %v1273 = vmax.f32 %v1184, %v1233
        %1274 = vmax.xlane.f32.xlu0 %v1273
        %v1275 = vpop.xlane.xlu0 %1274
        %v1276 = vmax.f32 %v1187, %v1236
        %1277 = vmax.xlane.f32.xlu0 %v1276
        %v1278 = vpop.xlane.xlu0 %1277
        %v1279 = vmax.f32 %v1189, %v1238
        %1280 = vmax.xlane.f32.xlu0 %v1279
        %v1281 = vpop.xlane.xlu0 %1280
        %v1282 = vmax.f32 %v1192, %v1241
        %1283 = vmax.xlane.f32.xlu0 %v1282
        %v1284 = vpop.xlane.xlu0 %1283
        %v1285 = vmax.f32 %v1194, %v1243
        %1286 = vmax.xlane.f32.xlu0 %v1285
        %v1287 = vpop.xlane.xlu0 %1286
        %v1288 = vmax.f32 %v1197, %v1246
        %1289 = vmax.xlane.f32.xlu0 %v1288
        %v1290 = vpop.xlane.xlu0 %1289
        %v1291 = vmax.f32 %v1199, %v1248
        %1292 = vmax.xlane.f32.xlu0 %v1291
        %v1293 = vpop.xlane.xlu0 %1292
        %v1294 = vmax.f32 %v1202, %v1251
        %1295 = vmax.xlane.f32.xlu0 %v1294
        %v1296 = vpop.xlane.xlu0 %1295
        %v1297 = vmax.f32 %v1204, %v1253
        %1298 = vmax.xlane.f32.xlu0 %v1297
        %v1299 = vpop.xlane.xlu0 %1298
        %v1300 = vmax.f32 %v1207, %v1256
        %1301 = vmax.xlane.f32.xlu0 %v1300
        %v1302 = vpop.xlane.xlu0 %1301
        %v1303 = vmax.f32 %v1209, %v1258
        %1304 = vmax.xlane.f32.xlu0 %v1303
        %v1305 = vpop.xlane.xlu0 %1304
        %v1306 = vmax.f32 %v1212, %v1261
        %1307 = vmax.xlane.f32.xlu0 %v1306
        %v1308 = vpop.xlane.xlu0 %1307
        %v1309 = vmax.f32 %v1214, %v1263
        %1310 = vmax.xlane.f32.xlu0 %v1309
        %v1311 = vpop.xlane.xlu0 %1310
        %v1312 = vmax.f32 %v1217, %v1266
        %1313 = vmax.xlane.f32.xlu0 %v1312
        %v1314 = vpop.xlane.xlu0 %1313
        %v1315 = vmax.f32 %v1219, %v1268
        %1316 = vmax.xlane.f32.xlu0 %v1315
        %v1317 = vpop.xlane.xlu0 %1316
        %v1318 = vsub.f32 %v1182, %v1272
        %v1319 = vsub.f32 %v1231, %v1272
        %v1320 = vsub.f32 %v1184, %v1275
        %v1321 = vsub.f32 %v1233, %v1275
        %v1322 = vsub.f32 %v1187, %v1278
        %v1323 = vsub.f32 %v1236, %v1278
        %v1324 = vsub.f32 %v1189, %v1281
        %v1325 = vsub.f32 %v1238, %v1281
        %v1326 = vsub.f32 %v1192, %v1284
        %v1327 = vsub.f32 %v1241, %v1284
        %v1328 = vsub.f32 %v1194, %v1287
        %v1329 = vsub.f32 %v1243, %v1287
        %v1330 = vsub.f32 %v1197, %v1290
        %v1331 = vsub.f32 %v1246, %v1290
        %v1332 = vsub.f32 %v1199, %v1293
        %v1333 = vsub.f32 %v1248, %v1293
        %v1334 = vsub.f32 %v1202, %v1296
        %v1335 = vsub.f32 %v1251, %v1296
        %v1336 = vsub.f32 %v1204, %v1299
        %v1337 = vsub.f32 %v1253, %v1299
        %v1338 = vsub.f32 %v1207, %v1302
        %v1339 = vsub.f32 %v1256, %v1302
        %v1340 = vsub.f32 %v1209, %v1305
        %v1341 = vsub.f32 %v1258, %v1305
        %v1342 = vsub.f32 %v1212, %v1308
        %v1343 = vsub.f32 %v1261, %v1308
        %v1344 = vsub.f32 %v1214, %v1311
        %v1345 = vsub.f32 %v1263, %v1311
        %v1346 = vsub.f32 %v1217, %v1314
        %v1347 = vsub.f32 %v1266, %v1314
        %v1348 = vsub.f32 %v1219, %v1317
        %v1349 = vsub.f32 %v1268, %v1317
        %v1350 = vpack.c.bf16 %v1320, %v1318
        %v1351 = vpack.c.bf16 %v1321, %v1319
        %v1352 = vpack.c.bf16 %v1324, %v1322
        %v1353 = vpack.c.bf16 %v1325, %v1323
        %v1354 = vpack.c.bf16 %v1328, %v1326
        %v1355 = vpack.c.bf16 %v1329, %v1327
        %v1356 = vpack.c.bf16 %v1332, %v1330
        %v1357 = vpack.c.bf16 %v1333, %v1331
        %v1358 = vpack.c.bf16 %v1336, %v1334
        %v1359 = vpack.c.bf16 %v1337, %v1335
        %v1360 = vpack.c.bf16 %v1340, %v1338
        %v1361 = vpack.c.bf16 %v1341, %v1339
        %v1362 = vpack.c.bf16 %v1344, %v1342
        %v1363 = vpack.c.bf16 %v1345, %v1343
        %v1364 = vpack.c.bf16 %v1348, %v1346
        %v1365 = vpack.c.bf16 %v1349, %v1347
        %v1366 = vunpack.c.l.bf16 %v1350
        %v1367 = vunpack.c.l.bf16 %v1351
        %v1368 = vunpack.c.h.bf16 %v1350
        %v1369 = vunpack.c.h.bf16 %v1351
        %v1370 = vunpack.c.l.bf16 %v1352
        %v1371 = vunpack.c.l.bf16 %v1353
        %v1372 = vunpack.c.h.bf16 %v1352
        %v1373 = vunpack.c.h.bf16 %v1353
        %v1374 = vunpack.c.l.bf16 %v1354
        %v1375 = vunpack.c.l.bf16 %v1355
        %v1376 = vunpack.c.h.bf16 %v1354
        %v1377 = vunpack.c.h.bf16 %v1355
        %v1378 = vunpack.c.l.bf16 %v1356
        %v1379 = vunpack.c.l.bf16 %v1357
        %v1380 = vunpack.c.h.bf16 %v1356
        %v1381 = vunpack.c.h.bf16 %v1357
        %v1382 = vunpack.c.l.bf16 %v1358
        %v1383 = vunpack.c.l.bf16 %v1359
        %v1384 = vunpack.c.h.bf16 %v1358
        %v1385 = vunpack.c.h.bf16 %v1359
        %v1386 = vunpack.c.l.bf16 %v1360
        %v1387 = vunpack.c.l.bf16 %v1361
        %v1388 = vunpack.c.h.bf16 %v1360
        %v1389 = vunpack.c.h.bf16 %v1361
        %v1390 = vunpack.c.l.bf16 %v1362
        %v1391 = vunpack.c.l.bf16 %v1363
        %v1392 = vunpack.c.h.bf16 %v1362
        %v1393 = vunpack.c.h.bf16 %v1363
        %v1394 = vunpack.c.l.bf16 %v1364
        %v1395 = vunpack.c.l.bf16 %v1365
        %v1396 = vunpack.c.h.bf16 %v1364
        %v1397 = vunpack.c.h.bf16 %v1365
        %v1398 = vmul.f32 %v1366, 1.442695
        %v1399 = vpow.pop %v1398
        %v1400 = vmul.f32 %v1367, 1.442695
        %v1401 = vpow.pop %v1400
        %v1402 = vmul.f32 %v1368, 1.442695
        %v1403 = vpow.pop %v1402
        %v1404 = vmul.f32 %v1369, 1.442695
        %v1405 = vpow.pop %v1404
        %v1406 = vmul.f32 %v1370, 1.442695
        %v1407 = vpow.pop %v1406
        %v1408 = vmul.f32 %v1371, 1.442695
        %v1409 = vpow.pop %v1408
        %v1410 = vmul.f32 %v1372, 1.442695
        %v1411 = vpow.pop %v1410
        %v1412 = vmul.f32 %v1373, 1.442695
        %v1413 = vpow.pop %v1412
        %v1414 = vmul.f32 %v1374, 1.442695
        %v1415 = vpow.pop %v1414
        %v1416 = vmul.f32 %v1375, 1.442695
        %v1417 = vpow.pop %v1416
        %v1418 = vmul.f32 %v1376, 1.442695
        %v1419 = vpow.pop %v1418
        %v1420 = vmul.f32 %v1377, 1.442695
        %v1421 = vpow.pop %v1420
        %v1422 = vmul.f32 %v1378, 1.442695
        %v1423 = vpow.pop %v1422
        %v1424 = vmul.f32 %v1379, 1.442695
        %v1425 = vpow.pop %v1424
        %v1426 = vmul.f32 %v1380, 1.442695
        %v1427 = vpow.pop %v1426
        %v1428 = vmul.f32 %v1381, 1.442695
        %v1429 = vpow.pop %v1428
        %v1430 = vmul.f32 %v1382, 1.442695
        %v1431 = vpow.pop %v1430
        %v1432 = vmul.f32 %v1383, 1.442695
        %v1433 = vpow.pop %v1432
        %v1434 = vmul.f32 %v1384, 1.442695
        %v1435 = vpow.pop %v1434
        %v1436 = vmul.f32 %v1385, 1.442695
        %v1437 = vpow.pop %v1436
        %v1438 = vmul.f32 %v1386, 1.442695
        %v1439 = vpow.pop %v1438
        %v1440 = vmul.f32 %v1387, 1.442695
        %v1441 = vpow.pop %v1440
        %v1442 = vmul.f32 %v1388, 1.442695
        %v1443 = vpow.pop %v1442
        %v1444 = vmul.f32 %v1389, 1.442695
        %v1445 = vpow.pop %v1444
        %v1446 = vmul.f32 %v1390, 1.442695
        %v1447 = vpow.pop %v1446
        %v1448 = vmul.f32 %v1391, 1.442695
        %v1449 = vpow.pop %v1448
        %v1450 = vmul.f32 %v1392, 1.442695
        %v1451 = vpow.pop %v1450
        %v1452 = vmul.f32 %v1393, 1.442695
        %v1453 = vpow.pop %v1452
        %v1454 = vmul.f32 %v1394, 1.442695
        %v1455 = vpow.pop %v1454
        %v1456 = vmul.f32 %v1395, 1.442695
        %v1457 = vpow.pop %v1456
        %v1458 = vmul.f32 %v1396, 1.442695
        %v1459 = vpow.pop %v1458
        %v1460 = vmul.f32 %v1397, 1.442695
        %v1461 = vpow.pop %v1460
        %v1462 = vpack.c.bf16 %v1403, %v1399
        %v1463 = vpack.c.bf16 %v1405, %v1401
        %v1464 = vpack.c.bf16 %v1411, %v1407
        %v1465 = vpack.c.bf16 %v1413, %v1409
        %v1466 = vpack.c.bf16 %v1419, %v1415
        %v1467 = vpack.c.bf16 %v1421, %v1417
        %v1468 = vpack.c.bf16 %v1427, %v1423
        %v1469 = vpack.c.bf16 %v1429, %v1425
        %v1470 = vpack.c.bf16 %v1435, %v1431
        %v1471 = vpack.c.bf16 %v1437, %v1433
        %v1472 = vpack.c.bf16 %v1443, %v1439
        %v1473 = vpack.c.bf16 %v1445, %v1441
        %v1474 = vpack.c.bf16 %v1451, %v1447
        %v1475 = vpack.c.bf16 %v1453, %v1449
        %v1476 = vpack.c.bf16 %v1459, %v1455
        %v1477 = vpack.c.bf16 %v1461, %v1457
        %1478 = vmatpush.bf16.msra.mxu0 1065369472
        %1479 = vmatpush.bf16.msra.mxu0 1065369472
        %1480 = vmatpush.bf16.msra.mxu0 1065369472
        %1481 = vmatpush.bf16.msra.mxu0 1065369472
        %1482 = vmatpush.bf16.msra.mxu0 1065369472
        %1483 = vmatpush.bf16.msra.mxu0 1065369472
        %1484 = vmatpush.bf16.msra.mxu0 1065369472
        %1485 = vmatpush.bf16.msra.mxu0 1065369472
        %1486 = vmatmul.bf16.gmra.mxu0 %v1462
        %v1487 = vpop.f32.mrf.mxu0
        %v1488 = vadd.f32 0.0, %v1487
        %v1489 = vpop.f32.mrf.mxu0
        %v1490 = vadd.f32 0.0, %v1489
        %1491 = vmatmul.bf16.gmra.mxu0 %v1464
        %v1492 = vpop.f32.mrf.mxu0
        %v1493 = vadd.f32 0.0, %v1492
        %v1494 = vpop.f32.mrf.mxu0
        %v1495 = vadd.f32 0.0, %v1494
        %1496 = vmatmul.bf16.gmra.mxu0 %v1466
        %v1497 = vpop.f32.mrf.mxu0
        %v1498 = vadd.f32 0.0, %v1497
        %v1499 = vpop.f32.mrf.mxu0
        %v1500 = vadd.f32 0.0, %v1499
        %1501 = vmatmul.bf16.gmra.mxu0 %v1468
        %v1502 = vpop.f32.mrf.mxu0
        %v1503 = vadd.f32 0.0, %v1502
        %v1504 = vpop.f32.mrf.mxu0
        %v1505 = vadd.f32 0.0, %v1504
        %1506 = vmatmul.bf16.gmra.mxu0 %v1470
        %v1507 = vpop.f32.mrf.mxu0
        %v1508 = vadd.f32 0.0, %v1507
        %v1509 = vpop.f32.mrf.mxu0
        %v1510 = vadd.f32 0.0, %v1509
        %1511 = vmatmul.bf16.gmra.mxu0 %v1472
        %v1512 = vpop.f32.mrf.mxu0
        %v1513 = vadd.f32 0.0, %v1512
        %v1514 = vpop.f32.mrf.mxu0
        %v1515 = vadd.f32 0.0, %v1514
        %1516 = vmatmul.bf16.gmra.mxu0 %v1474
        %v1517 = vpop.f32.mrf.mxu0
        %v1518 = vadd.f32 0.0, %v1517
        %v1519 = vpop.f32.mrf.mxu0
        %v1520 = vadd.f32 0.0, %v1519
        %1521 = vmatmul.bf16.gmra.mxu0 %v1476
        %v1522 = vpop.f32.mrf.mxu0
        %v1523 = vadd.f32 0.0, %v1522
        %v1524 = vpop.f32.mrf.mxu0
        %v1525 = vadd.f32 0.0, %v1524
        %1526 = vdwg.mxu0
        %1527 = vmatpush.bf16.msra.mxu0 1065369472
        %1528 = vmatpush.bf16.msra.mxu0 1065369472
        %1529 = vmatpush.bf16.msra.mxu0 1065369472
        %1530 = vmatpush.bf16.msra.mxu0 1065369472
        %1531 = vmatpush.bf16.msra.mxu0 1065369472
        %1532 = vmatpush.bf16.msra.mxu0 1065369472
        %1533 = vmatpush.bf16.msra.mxu0 1065369472
        %1534 = vmatpush.bf16.msra.mxu0 1065369472
        %1535 = vmatmul.bf16.gmra.mxu0 %v1463
        %v1536 = vpop.f32.mrf.mxu0
        %v1537 = vadd.f32 %v1488, %v1536
        %v1538 = vpop.f32.mrf.mxu0
        %v1539 = vadd.f32 %v1490, %v1538
        %1540 = vmatmul.bf16.gmra.mxu0 %v1465
        %v1541 = vpop.f32.mrf.mxu0
        %v1542 = vadd.f32 %v1493, %v1541
        %v1543 = vpop.f32.mrf.mxu0
        %v1544 = vadd.f32 %v1495, %v1543
        %1545 = vmatmul.bf16.gmra.mxu0 %v1467
        %v1546 = vpop.f32.mrf.mxu0
        %v1547 = vadd.f32 %v1498, %v1546
        %v1548 = vpop.f32.mrf.mxu0
        %v1549 = vadd.f32 %v1500, %v1548
        %1550 = vmatmul.bf16.gmra.mxu0 %v1469
        %v1551 = vpop.f32.mrf.mxu0
        %v1552 = vadd.f32 %v1503, %v1551
        %v1553 = vpop.f32.mrf.mxu0
        %v1554 = vadd.f32 %v1505, %v1553
        %1555 = vmatmul.bf16.gmra.mxu0 %v1471
        %v1556 = vpop.f32.mrf.mxu0
        %v1557 = vadd.f32 %v1508, %v1556
        %v1558 = vpop.f32.mrf.mxu0
        %v1559 = vadd.f32 %v1510, %v1558
        %1560 = vmatmul.bf16.gmra.mxu0 %v1473
        %v1561 = vpop.f32.mrf.mxu0
        %v1562 = vadd.f32 %v1513, %v1561
        %v1563 = vpop.f32.mrf.mxu0
        %v1564 = vadd.f32 %v1515, %v1563
        %1565 = vmatmul.bf16.gmra.mxu0 %v1475
        %v1566 = vpop.f32.mrf.mxu0
        %v1567 = vadd.f32 %v1518, %v1566
        %v1568 = vpop.f32.mrf.mxu0
        %v1569 = vadd.f32 %v1520, %v1568
        %1570 = vmatmul.bf16.gmra.mxu0 %v1477
        %v1571 = vpop.f32.mrf.mxu0
        %v1572 = vadd.f32 %v1523, %v1571
        %v1573 = vpop.f32.mrf.mxu0
        %v1574 = vadd.f32 %v1525, %v1573
        %1575 = vdwg.mxu0
        %v1576 = vrcp.pop %v1537
        %v1577 = vrcp.pop %v1539
        %v1578 = vrcp.pop %v1542
        %v1579 = vrcp.pop %v1544
        %v1580 = vrcp.pop %v1547
        %v1581 = vrcp.pop %v1549
        %v1582 = vrcp.pop %v1552
        %v1583 = vrcp.pop %v1554
        %v1584 = vrcp.pop %v1557
        %v1585 = vrcp.pop %v1559
        %v1586 = vrcp.pop %v1562
        %v1587 = vrcp.pop %v1564
        %v1588 = vrcp.pop %v1567
        %v1589 = vrcp.pop %v1569
        %v1590 = vrcp.pop %v1572
        %v1591 = vrcp.pop %v1574
        %1593 = vset.pattern.permute.xlu0 0
        %1594 = vperm.xlu0 %1593, %v1576
        %v1595 = vpop.permute.xlu0 %1594
        %1598 = vset.pattern.permute.xlu0 0
        %1599 = vperm.xlu0 %1598, %v1577
        %v1600 = vpop.permute.xlu0 %1599
        %1603 = vset.pattern.permute.xlu0 0
        %1604 = vperm.xlu0 %1603, %v1578
        %v1605 = vpop.permute.xlu0 %1604
        %1608 = vset.pattern.permute.xlu0 0
        %1609 = vperm.xlu0 %1608, %v1579
        %v1610 = vpop.permute.xlu0 %1609
        %1613 = vset.pattern.permute.xlu0 0
        %1614 = vperm.xlu0 %1613, %v1580
        %v1615 = vpop.permute.xlu0 %1614
        %1618 = vset.pattern.permute.xlu0 0
        %1619 = vperm.xlu0 %1618, %v1581
        %v1620 = vpop.permute.xlu0 %1619
        %1623 = vset.pattern.permute.xlu0 0
        %1624 = vperm.xlu0 %1623, %v1582
        %v1625 = vpop.permute.xlu0 %1624
        %1628 = vset.pattern.permute.xlu0 0
        %1629 = vperm.xlu0 %1628, %v1583
        %v1630 = vpop.permute.xlu0 %1629
        %1633 = vset.pattern.permute.xlu0 0
        %1634 = vperm.xlu0 %1633, %v1584
        %v1635 = vpop.permute.xlu0 %1634
        %1638 = vset.pattern.permute.xlu0 0
        %1639 = vperm.xlu0 %1638, %v1585
        %v1640 = vpop.permute.xlu0 %1639
        %1643 = vset.pattern.permute.xlu0 0
        %1644 = vperm.xlu0 %1643, %v1586
        %v1645 = vpop.permute.xlu0 %1644
        %1648 = vset.pattern.permute.xlu0 0
        %1649 = vperm.xlu0 %1648, %v1587
        %v1650 = vpop.permute.xlu0 %1649
        %1653 = vset.pattern.permute.xlu0 0
        %1654 = vperm.xlu0 %1653, %v1588
        %v1655 = vpop.permute.xlu0 %1654
        %1658 = vset.pattern.permute.xlu0 0
        %1659 = vperm.xlu0 %1658, %v1589
        %v1660 = vpop.permute.xlu0 %1659
        %1663 = vset.pattern.permute.xlu0 0
        %1664 = vperm.xlu0 %1663, %v1590
        %v1665 = vpop.permute.xlu0 %1664
        %1668 = vset.pattern.permute.xlu0 0
        %1669 = vperm.xlu0 %1668, %v1591
        %v1670 = vpop.permute.xlu0 %1669
        %v1672 = vmul.f32 %v1029, %v1595
        %v1673 = vmul.f32 %v1031, %v1600
        %v1674 = vmul.f32 %v1034, %v1605
        %v1675 = vmul.f32 %v1036, %v1610
        %v1676 = vmul.f32 %v1039, %v1615
        %v1677 = vmul.f32 %v1041, %v1620
        %v1678 = vmul.f32 %v1044, %v1625
        %v1679 = vmul.f32 %v1046, %v1630
        %v1680 = vmul.f32 %v1049, %v1635
        %v1681 = vmul.f32 %v1051, %v1640
        %v1682 = vmul.f32 %v1054, %v1645
        %v1683 = vmul.f32 %v1056, %v1650
        %v1684 = vmul.f32 %v1059, %v1655
        %v1685 = vmul.f32 %v1061, %v1660
        %v1686 = vmul.f32 %v1064, %v1665
        %v1687 = vmul.f32 %v1066, %v1670
        %v1688 = vpack.c.bf16 %v1673, %v1672
        %v1689 = vpack.c.bf16 %v1675, %v1674
        %v1690 = vpack.c.bf16 %v1677, %v1676
        %v1691 = vpack.c.bf16 %v1679, %v1678
        %v1692 = vpack.c.bf16 %v1681, %v1680
        %v1693 = vpack.c.bf16 %v1683, %v1682
        %v1694 = vpack.c.bf16 %v1685, %v1684
        %v1695 = vpack.c.bf16 %v1687, %v1686
        %v1696 = vld [vmem:[#allocation3] sm:$0xff]
        %v1697 = vld [vmem:[#allocation3 + $0x8] sm:$0xff]
        %v1698 = vld [vmem:[#allocation3 + $0x10] sm:$0xff]
        %v1699 = vld [vmem:[#allocation3 + $0x18] sm:$0xff]
        %v1700 = vld [vmem:[#allocation3 + $0x20] sm:$0xff]
        %v1701 = vld [vmem:[#allocation3 + $0x28] sm:$0xff]
        %v1702 = vld [vmem:[#allocation3 + $0x30] sm:$0xff]
        %v1703 = vld [vmem:[#allocation3 + $0x38] sm:$0xff]
        %v1704 = vld [vmem:[#allocation3 + $0x40] sm:$0xff]
        %v1705 = vld [vmem:[#allocation3 + $0x48] sm:$0xff]
        %v1706 = vld [vmem:[#allocation3 + $0x50] sm:$0xff]
        %v1707 = vld [vmem:[#allocation3 + $0x58] sm:$0xff]
        %v1708 = vld [vmem:[#allocation3 + $0x60] sm:$0xff]
        %v1709 = vld [vmem:[#allocation3 + $0x68] sm:$0xff]
        %v1710 = vld [vmem:[#allocation3 + $0x70] sm:$0xff]
        %v1711 = vld [vmem:[#allocation3 + $0x78] sm:$0xff]
        %v1712 = vld [vmem:[#allocation3 + $0x80] sm:$0xff]
        %v1713 = vld [vmem:[#allocation3 + $0x88] sm:$0xff]
        %v1714 = vld [vmem:[#allocation3 + $0x90] sm:$0xff]
        %v1715 = vld [vmem:[#allocation3 + $0x98] sm:$0xff]
        %v1716 = vld [vmem:[#allocation3 + $0xa0] sm:$0xff]
        %v1717 = vld [vmem:[#allocation3 + $0xa8] sm:$0xff]
        %v1718 = vld [vmem:[#allocation3 + $0xb0] sm:$0xff]
        %v1719 = vld [vmem:[#allocation3 + $0xb8] sm:$0xff]
        %v1720 = vld [vmem:[#allocation3 + $0xc0] sm:$0xff]
        %v1721 = vld [vmem:[#allocation3 + $0xc8] sm:$0xff]
        %v1722 = vld [vmem:[#allocation3 + $0xd0] sm:$0xff]
        %v1723 = vld [vmem:[#allocation3 + $0xd8] sm:$0xff]
        %v1724 = vld [vmem:[#allocation3 + $0xe0] sm:$0xff]
        %v1725 = vld [vmem:[#allocation3 + $0xe8] sm:$0xff]
        %v1726 = vld [vmem:[#allocation3 + $0xf0] sm:$0xff]
        %v1727 = vld [vmem:[#allocation3 + $0xf8] sm:$0xff]
        %1728 = vxpose.xlu0.c.b16.start [1/8] %v1688, 128
        %1729 = vxpose.xlu0.c.b16.cont [2/8] %v1689, 128
        %1730 = vxpose.xlu0.c.b16.cont [3/8] %v1690, 128
        %1731 = vxpose.xlu0.c.b16.cont [4/8] %v1691, 128
        %1732 = vxpose.xlu0.c.b16.cont [5/8] %v1692, 128
        %1733 = vxpose.xlu0.c.b16.cont [6/8] %v1693, 128
        %1734 = vxpose.xlu0.c.b16.cont [7/8] %v1694, 128
        %1735 = vxpose.xlu0.c.b16.end [8/8] %v1695, 128
        %v1736 = vpop.trf.xlu0
        %v1737 = vpop.trf.xlu0
        %v1738 = vpop.trf.xlu0
        %v1739 = vpop.trf.xlu0
        %v1740 = vpop.trf.xlu0
        %v1741 = vpop.trf.xlu0
        %v1742 = vpop.trf.xlu0
        %v1743 = vpop.trf.xlu0
        %1744 = vmatpush.bf16.msra.mxu0 %v1476
        %1745 = vmatpush.bf16.msra.mxu0 %v1474
        %1746 = vmatpush.bf16.msra.mxu0 %v1472
        %1747 = vmatpush.bf16.msra.mxu0 %v1470
        %1748 = vmatpush.bf16.msra.mxu0 %v1468
        %1749 = vmatpush.bf16.msra.mxu0 %v1466
        %1750 = vmatpush.bf16.msra.mxu0 %v1464
        %1751 = vmatpush.bf16.msra.mxu0 %v1462
        %1752 = vmatmul.bf16.gmra.mxu0 %v1736
        %v1753 = vpop.f32.mrf.mxu0
        %v1754 = vadd.f32 0.0, %v1753
        %v1755 = vpop.f32.mrf.mxu0
        %v1756 = vadd.f32 0.0, %v1755
        %1757 = vmatmul.bf16.gmra.mxu0 %v1737
        %v1758 = vpop.f32.mrf.mxu0
        %v1759 = vadd.f32 0.0, %v1758
        %v1760 = vpop.f32.mrf.mxu0
        %v1761 = vadd.f32 0.0, %v1760
        %1762 = vmatmul.bf16.gmra.mxu0 %v1738
        %v1763 = vpop.f32.mrf.mxu0
        %v1764 = vadd.f32 0.0, %v1763
        %v1765 = vpop.f32.mrf.mxu0
        %v1766 = vadd.f32 0.0, %v1765
        %1767 = vmatmul.bf16.gmra.mxu0 %v1739
        %v1768 = vpop.f32.mrf.mxu0
        %v1769 = vadd.f32 0.0, %v1768
        %v1770 = vpop.f32.mrf.mxu0
        %v1771 = vadd.f32 0.0, %v1770
        %1772 = vmatmul.bf16.gmra.mxu0 %v1740
        %v1773 = vpop.f32.mrf.mxu0
        %v1774 = vadd.f32 0.0, %v1773
        %v1775 = vpop.f32.mrf.mxu0
        %v1776 = vadd.f32 0.0, %v1775
        %1777 = vmatmul.bf16.gmra.mxu0 %v1741
        %v1778 = vpop.f32.mrf.mxu0
        %v1779 = vadd.f32 0.0, %v1778
        %v1780 = vpop.f32.mrf.mxu0
        %v1781 = vadd.f32 0.0, %v1780
        %1782 = vmatmul.bf16.gmra.mxu0 %v1742
        %v1783 = vpop.f32.mrf.mxu0
        %v1784 = vadd.f32 0.0, %v1783
        %v1785 = vpop.f32.mrf.mxu0
        %v1786 = vadd.f32 0.0, %v1785
        %1787 = vmatmul.bf16.gmra.mxu0 %v1743
        %v1788 = vpop.f32.mrf.mxu0
        %v1789 = vadd.f32 0.0, %v1788
        %v1790 = vpop.f32.mrf.mxu0
        %v1791 = vadd.f32 0.0, %v1790
        %1792 = vdwg.mxu0
        %1793 = vmatpush.bf16.msra.mxu0 %v1477
        %1794 = vmatpush.bf16.msra.mxu0 %v1475
        %1795 = vmatpush.bf16.msra.mxu0 %v1473
        %1796 = vmatpush.bf16.msra.mxu0 %v1471
        %1797 = vmatpush.bf16.msra.mxu0 %v1469
        %1798 = vmatpush.bf16.msra.mxu0 %v1467
        %1799 = vmatpush.bf16.msra.mxu0 %v1465
        %1800 = vmatpush.bf16.msra.mxu0 %v1463
        %1801 = vmatmul.bf16.gmra.mxu0 %v1736
        %v1802 = vpop.f32.mrf.mxu0
        %v1803 = vadd.f32 0.0, %v1802
        %v1804 = vpop.f32.mrf.mxu0
        %v1805 = vadd.f32 0.0, %v1804
        %1806 = vmatmul.bf16.gmra.mxu0 %v1737
        %v1807 = vpop.f32.mrf.mxu0
        %v1808 = vadd.f32 0.0, %v1807
        %v1809 = vpop.f32.mrf.mxu0
        %v1810 = vadd.f32 0.0, %v1809
        %1811 = vmatmul.bf16.gmra.mxu0 %v1738
        %v1812 = vpop.f32.mrf.mxu0
        %v1813 = vadd.f32 0.0, %v1812
        %v1814 = vpop.f32.mrf.mxu0
        %v1815 = vadd.f32 0.0, %v1814
        %1816 = vmatmul.bf16.gmra.mxu0 %v1739
        %v1817 = vpop.f32.mrf.mxu0
        %v1818 = vadd.f32 0.0, %v1817
        %v1819 = vpop.f32.mrf.mxu0
        %v1820 = vadd.f32 0.0, %v1819
        %1821 = vmatmul.bf16.gmra.mxu0 %v1740
        %v1822 = vpop.f32.mrf.mxu0
        %v1823 = vadd.f32 0.0, %v1822
        %v1824 = vpop.f32.mrf.mxu0
        %v1825 = vadd.f32 0.0, %v1824
        %1826 = vmatmul.bf16.gmra.mxu0 %v1741
        %v1827 = vpop.f32.mrf.mxu0
        %v1828 = vadd.f32 0.0, %v1827
        %v1829 = vpop.f32.mrf.mxu0
        %v1830 = vadd.f32 0.0, %v1829
        %1831 = vmatmul.bf16.gmra.mxu0 %v1742
        %v1832 = vpop.f32.mrf.mxu0
        %v1833 = vadd.f32 0.0, %v1832
        %v1834 = vpop.f32.mrf.mxu0
        %v1835 = vadd.f32 0.0, %v1834
        %1836 = vmatmul.bf16.gmra.mxu0 %v1743
        %v1837 = vpop.f32.mrf.mxu0
        %v1838 = vadd.f32 0.0, %v1837
        %v1839 = vpop.f32.mrf.mxu0
        %v1840 = vadd.f32 0.0, %v1839
        %1841 = vdwg.mxu0
        %v1842 = vadd.f32 %v1696, %v1754
        %v1843 = vadd.f32 %v1697, %v1803
        %v1844 = vadd.f32 %v1698, %v1756
        %v1845 = vadd.f32 %v1699, %v1805
        %v1846 = vadd.f32 %v1700, %v1759
        %v1847 = vadd.f32 %v1701, %v1808
        %v1848 = vadd.f32 %v1702, %v1761
        %v1849 = vadd.f32 %v1703, %v1810
        %v1850 = vadd.f32 %v1704, %v1764
        %v1851 = vadd.f32 %v1705, %v1813
        %v1852 = vadd.f32 %v1706, %v1766
        %v1853 = vadd.f32 %v1707, %v1815
        %v1854 = vadd.f32 %v1708, %v1769
        %v1855 = vadd.f32 %v1709, %v1818
        %v1856 = vadd.f32 %v1710, %v1771
        %v1857 = vadd.f32 %v1711, %v1820
        %v1858 = vadd.f32 %v1712, %v1774
        %v1859 = vadd.f32 %v1713, %v1823
        %v1860 = vadd.f32 %v1714, %v1776
        %v1861 = vadd.f32 %v1715, %v1825
        %v1862 = vadd.f32 %v1716, %v1779
        %v1863 = vadd.f32 %v1717, %v1828
        %v1864 = vadd.f32 %v1718, %v1781
        %v1865 = vadd.f32 %v1719, %v1830
        %v1866 = vadd.f32 %v1720, %v1784
        %v1867 = vadd.f32 %v1721, %v1833
        %v1868 = vadd.f32 %v1722, %v1786
        %v1869 = vadd.f32 %v1723, %v1835
        %v1870 = vadd.f32 %v1724, %v1789
        %v1871 = vadd.f32 %v1725, %v1838
        %v1872 = vadd.f32 %v1726, %v1791
        %v1873 = vadd.f32 %v1727, %v1840
        %1874 = vst [vmem:[#allocation3] sm:$0xff] %v1842
        %1875 = vst [vmem:[#allocation3 + $0x8] sm:$0xff] %v1843
        %1876 = vst [vmem:[#allocation3 + $0x10] sm:$0xff] %v1844
        %1877 = vst [vmem:[#allocation3 + $0x18] sm:$0xff] %v1845
        %1878 = vst [vmem:[#allocation3 + $0x20] sm:$0xff] %v1846
        %1879 = vst [vmem:[#allocation3 + $0x28] sm:$0xff] %v1847
        %1880 = vst [vmem:[#allocation3 + $0x30] sm:$0xff] %v1848
        %1881 = vst [vmem:[#allocation3 + $0x38] sm:$0xff] %v1849
        %1882 = vst [vmem:[#allocation3 + $0x40] sm:$0xff] %v1850
        %1883 = vst [vmem:[#allocation3 + $0x48] sm:$0xff] %v1851
        %1884 = vst [vmem:[#allocation3 + $0x50] sm:$0xff] %v1852
        %1885 = vst [vmem:[#allocation3 + $0x58] sm:$0xff] %v1853
        %1886 = vst [vmem:[#allocation3 + $0x60] sm:$0xff] %v1854
        %1887 = vst [vmem:[#allocation3 + $0x68] sm:$0xff] %v1855
        %1888 = vst [vmem:[#allocation3 + $0x70] sm:$0xff] %v1856
        %1889 = vst [vmem:[#allocation3 + $0x78] sm:$0xff] %v1857
        %1890 = vst [vmem:[#allocation3 + $0x80] sm:$0xff] %v1858
        %1891 = vst [vmem:[#allocation3 + $0x88] sm:$0xff] %v1859
        %1892 = vst [vmem:[#allocation3 + $0x90] sm:$0xff] %v1860
        %1893 = vst [vmem:[#allocation3 + $0x98] sm:$0xff] %v1861
        %1894 = vst [vmem:[#allocation3 + $0xa0] sm:$0xff] %v1862
        %1895 = vst [vmem:[#allocation3 + $0xa8] sm:$0xff] %v1863
        %1896 = vst [vmem:[#allocation3 + $0xb0] sm:$0xff] %v1864
        %1897 = vst [vmem:[#allocation3 + $0xb8] sm:$0xff] %v1865
        %1898 = vst [vmem:[#allocation3 + $0xc0] sm:$0xff] %v1866
        %1899 = vst [vmem:[#allocation3 + $0xc8] sm:$0xff] %v1867
        %1900 = vst [vmem:[#allocation3 + $0xd0] sm:$0xff] %v1868
        %1901 = vst [vmem:[#allocation3 + $0xd8] sm:$0xff] %v1869
        %1902 = vst [vmem:[#allocation3 + $0xe0] sm:$0xff] %v1870
        %1903 = vst [vmem:[#allocation3 + $0xe8] sm:$0xff] %v1871
        %1904 = vst [vmem:[#allocation3 + $0xf0] sm:$0xff] %v1872
        %1905 = vst [vmem:[#allocation3 + $0xf8] sm:$0xff] %v1873
        %p1906 = scmp.eq.s32.totalorder %s30, 1
        // Predicated region
        $region65: #{tpu_custom_call.1} parent=47 // pred_check
          %p1907 = pneg %p1906
        $region66: #{tpu_custom_call.1} parent=47 // pred_check_branch
          %1909 = sbr.rel (%p1907) target = $region68
        $region67: #{tpu_custom_call.1} parent=47 // pred_region
          %v1910 = vld [vmem:[#allocation3] sm:$0xff]
          %v1911 = vld [vmem:[#allocation3 + $0x8] sm:$0xff]
          %v1912 = vld [vmem:[#allocation3 + $0x10] sm:$0xff]
          %v1913 = vld [vmem:[#allocation3 + $0x18] sm:$0xff]
          %v1914 = vld [vmem:[#allocation3 + $0x20] sm:$0xff]
          %v1915 = vld [vmem:[#allocation3 + $0x28] sm:$0xff]
          %v1916 = vld [vmem:[#allocation3 + $0x30] sm:$0xff]
          %v1917 = vld [vmem:[#allocation3 + $0x38] sm:$0xff]
          %v1918 = vld [vmem:[#allocation3 + $0x40] sm:$0xff]
          %v1919 = vld [vmem:[#allocation3 + $0x48] sm:$0xff]
          %v1920 = vld [vmem:[#allocation3 + $0x50] sm:$0xff]
          %v1921 = vld [vmem:[#allocation3 + $0x58] sm:$0xff]
          %v1922 = vld [vmem:[#allocation3 + $0x60] sm:$0xff]
          %v1923 = vld [vmem:[#allocation3 + $0x68] sm:$0xff]
          %v1924 = vld [vmem:[#allocation3 + $0x70] sm:$0xff]
          %v1925 = vld [vmem:[#allocation3 + $0x78] sm:$0xff]
          %v1926 = vld [vmem:[#allocation3 + $0x80] sm:$0xff]
          %v1927 = vld [vmem:[#allocation3 + $0x88] sm:$0xff]
          %v1928 = vld [vmem:[#allocation3 + $0x90] sm:$0xff]
          %v1929 = vld [vmem:[#allocation3 + $0x98] sm:$0xff]
          %v1930 = vld [vmem:[#allocation3 + $0xa0] sm:$0xff]
          %v1931 = vld [vmem:[#allocation3 + $0xa8] sm:$0xff]
          %v1932 = vld [vmem:[#allocation3 + $0xb0] sm:$0xff]
          %v1933 = vld [vmem:[#allocation3 + $0xb8] sm:$0xff]
          %v1934 = vld [vmem:[#allocation3 + $0xc0] sm:$0xff]
          %v1935 = vld [vmem:[#allocation3 + $0xc8] sm:$0xff]
          %v1936 = vld [vmem:[#allocation3 + $0xd0] sm:$0xff]
          %v1937 = vld [vmem:[#allocation3 + $0xd8] sm:$0xff]
          %v1938 = vld [vmem:[#allocation3 + $0xe0] sm:$0xff]
          %v1939 = vld [vmem:[#allocation3 + $0xe8] sm:$0xff]
          %v1940 = vld [vmem:[#allocation3 + $0xf0] sm:$0xff]
          %v1941 = vld [vmem:[#allocation3 + $0xf8] sm:$0xff]
          %v1942 = vpack.c.bf16 %v1912, %v1910
          %v1943 = vpack.c.bf16 %v1913, %v1911
          %v1944 = vpack.c.bf16 %v1916, %v1914
          %v1945 = vpack.c.bf16 %v1917, %v1915
          %v1946 = vpack.c.bf16 %v1920, %v1918
          %v1947 = vpack.c.bf16 %v1921, %v1919
          %v1948 = vpack.c.bf16 %v1924, %v1922
          %v1949 = vpack.c.bf16 %v1925, %v1923
          %v1950 = vpack.c.bf16 %v1928, %v1926
          %v1951 = vpack.c.bf16 %v1929, %v1927
          %v1952 = vpack.c.bf16 %v1932, %v1930
          %v1953 = vpack.c.bf16 %v1933, %v1931
          %v1954 = vpack.c.bf16 %v1936, %v1934
          %v1955 = vpack.c.bf16 %v1937, %v1935
          %v1956 = vpack.c.bf16 %v1940, %v1938
          %v1957 = vpack.c.bf16 %v1941, %v1939
          %v1958 = vld [vmem:[#allocation9] sm:$0xf]
          %v1959 = vld [vmem:[#allocation9 + $0x4] sm:$0xf]
          %v1960 = vld [vmem:[#allocation9 + $0x8] sm:$0xf]
          %v1961 = vld [vmem:[#allocation9 + $0xc] sm:$0xf]
          %v1962 = vld [vmem:[#allocation9 + $0x10] sm:$0xf]
          %v1963 = vld [vmem:[#allocation9 + $0x14] sm:$0xf]
          %v1964 = vld [vmem:[#allocation9 + $0x18] sm:$0xf]
          %v1965 = vld [vmem:[#allocation9 + $0x1c] sm:$0xf]
          %v1966 = vld [vmem:[#allocation9 + $0x20] sm:$0xf]
          %v1967 = vld [vmem:[#allocation9 + $0x24] sm:$0xf]
          %v1968 = vld [vmem:[#allocation9 + $0x28] sm:$0xf]
          %v1969 = vld [vmem:[#allocation9 + $0x2c] sm:$0xf]
          %v1970 = vld [vmem:[#allocation9 + $0x30] sm:$0xf]
          %v1971 = vld [vmem:[#allocation9 + $0x34] sm:$0xf]
          %v1972 = vld [vmem:[#allocation9 + $0x38] sm:$0xf]
          %v1973 = vld [vmem:[#allocation9 + $0x3c] sm:$0xf]
          %v1974 = vld [vmem:[%s6] sm:$0x1]
          %v1976 = vperm.slane %v1974, 0
          %1978 = vxpose.binary.xlu0.c.b16.start [1/16] %v1943, %v1942, 128
          %1979 = vxpose.binary.xlu0.c.b16.cont [2/16] %v1945, %v1944, 128
          %1980 = vxpose.binary.xlu0.c.b16.cont [3/16] %v1947, %v1946, 128
          %1981 = vxpose.binary.xlu0.c.b16.cont [4/16] %v1949, %v1948, 128
          %1982 = vxpose.binary.xlu0.c.b16.cont [5/16] %v1951, %v1950, 128
          %1983 = vxpose.binary.xlu0.c.b16.cont [6/16] %v1953, %v1952, 128
          %1984 = vxpose.binary.xlu0.c.b16.cont [7/16] %v1955, %v1954, 128
          %1985 = vxpose.binary.xlu0.c.b16.end [8/16] %v1957, %v1956, 128
          %v1986 = vpop.trf.xlu0
          %v1987 = vpop.trf.xlu0
          %v1988 = vpop.trf.xlu0
          %v1989 = vpop.trf.xlu0
          %v1990 = vpop.trf.xlu0
          %v1991 = vpop.trf.xlu0
          %v1992 = vpop.trf.xlu0
          %v1993 = vpop.trf.xlu0
          %v1994 = vpop.trf.xlu0
          %v1995 = vpop.trf.xlu0
          %v1996 = vpop.trf.xlu0
          %v1997 = vpop.trf.xlu0
          %v1998 = vpop.trf.xlu0
          %v1999 = vpop.trf.xlu0
          %v2000 = vpop.trf.xlu0
          %v2001 = vpop.trf.xlu0
          %v2018 = vunpack.c.l.b16 %v1958
          %v2019 = vunpack.c.l.b16 %v1959
          %v2020 = vunpack.c.l.b16 %v1960
          %v2021 = vunpack.c.l.b16 %v1961
          %v2022 = vunpack.c.l.b16 %v1962
          %v2023 = vunpack.c.l.b16 %v1963
          %v2024 = vunpack.c.l.b16 %v1964
          %v2025 = vunpack.c.l.b16 %v1965
          %v2026 = vunpack.c.l.b16 %v1966
          %v2027 = vunpack.c.l.b16 %v1967
          %v2028 = vunpack.c.l.b16 %v1968
          %v2029 = vunpack.c.l.b16 %v1969
          %v2030 = vunpack.c.l.b16 %v1970
          %v2031 = vunpack.c.l.b16 %v1971
          %v2032 = vunpack.c.l.b16 %v1972
          %v2033 = vunpack.c.l.b16 %v1973
          %v2034 = vpack.c.b16 %v2019, %v2018
          %v2035 = vpack.c.b16 %v2021, %v2020
          %v2036 = vpack.c.b16 %v2023, %v2022
          %v2037 = vpack.c.b16 %v2025, %v2024
          %v2038 = vpack.c.b16 %v2027, %v2026
          %v2039 = vpack.c.b16 %v2029, %v2028
          %v2040 = vpack.c.b16 %v2031, %v2030
          %v2041 = vpack.c.b16 %v2033, %v2032
          %2050 = vmatpush.bf16.msra.mxu0 %v2041
          %2051 = vmatpush.bf16.msra.mxu0 %v2040
          %2052 = vmatpush.bf16.msra.mxu0 %v2039
          %2053 = vmatpush.bf16.msra.mxu0 %v2038
          %2054 = vmatpush.bf16.msra.mxu0 %v2037
          %2055 = vmatpush.bf16.msra.mxu0 %v2036
          %2056 = vmatpush.bf16.msra.mxu0 %v2035
          %2057 = vmatpush.bf16.msra.mxu0 %v2034
          %2058 = vmatmul.bf16.gmra.mxu0 %v1986
          %v2059 = vpop.f32.mrf.mxu0
          %v2060 = vadd.f32 %v1976, %v2059
          %v2061 = vpop.f32.mrf.mxu0
          %v2062 = vadd.f32 %v1976, %v2061
          %2063 = vmatmul.bf16.gmra.mxu0 %v1988
          %v2064 = vpop.f32.mrf.mxu0
          %v2065 = vadd.f32 %v1976, %v2064
          %v2066 = vpop.f32.mrf.mxu0
          %v2067 = vadd.f32 %v1976, %v2066
          %2068 = vmatmul.bf16.gmra.mxu0 %v1990
          %v2069 = vpop.f32.mrf.mxu0
          %v2070 = vadd.f32 %v1976, %v2069
          %v2071 = vpop.f32.mrf.mxu0
          %v2072 = vadd.f32 %v1976, %v2071
          %2073 = vmatmul.bf16.gmra.mxu0 %v1992
          %v2074 = vpop.f32.mrf.mxu0
          %v2075 = vadd.f32 %v1976, %v2074
          %v2076 = vpop.f32.mrf.mxu0
          %v2077 = vadd.f32 %v1976, %v2076
          %2078 = vmatmul.bf16.gmra.mxu0 %v1994
          %v2079 = vpop.f32.mrf.mxu0
          %v2080 = vadd.f32 %v1976, %v2079
          %v2081 = vpop.f32.mrf.mxu0
          %v2082 = vadd.f32 %v1976, %v2081
          %2083 = vmatmul.bf16.gmra.mxu0 %v1996
          %v2084 = vpop.f32.mrf.mxu0
          %v2085 = vadd.f32 %v1976, %v2084
          %v2086 = vpop.f32.mrf.mxu0
          %v2087 = vadd.f32 %v1976, %v2086
          %2088 = vmatmul.bf16.gmra.mxu0 %v1998
          %v2089 = vpop.f32.mrf.mxu0
          %v2090 = vadd.f32 %v1976, %v2089
          %v2091 = vpop.f32.mrf.mxu0
          %v2092 = vadd.f32 %v1976, %v2091
          %2093 = vmatmul.bf16.gmra.mxu0 %v2000
          %v2094 = vpop.f32.mrf.mxu0
          %v2095 = vadd.f32 %v1976, %v2094
          %v2096 = vpop.f32.mrf.mxu0
          %v2097 = vadd.f32 %v1976, %v2096
          %2098 = vmatmul.bf16.gmra.mxu0 %v1987
          %v2099 = vpop.f32.mrf.mxu0
          %v2100 = vadd.f32 %v1976, %v2099
          %v2101 = vpop.f32.mrf.mxu0
          %v2102 = vadd.f32 %v1976, %v2101
          %2103 = vmatmul.bf16.gmra.mxu0 %v1989
          %v2104 = vpop.f32.mrf.mxu0
          %v2105 = vadd.f32 %v1976, %v2104
          %v2106 = vpop.f32.mrf.mxu0
          %v2107 = vadd.f32 %v1976, %v2106
          %2108 = vmatmul.bf16.gmra.mxu0 %v1991
          %v2109 = vpop.f32.mrf.mxu0
          %v2110 = vadd.f32 %v1976, %v2109
          %v2111 = vpop.f32.mrf.mxu0
          %v2112 = vadd.f32 %v1976, %v2111
          %2113 = vmatmul.bf16.gmra.mxu0 %v1993
          %v2114 = vpop.f32.mrf.mxu0
          %v2115 = vadd.f32 %v1976, %v2114
          %v2116 = vpop.f32.mrf.mxu0
          %v2117 = vadd.f32 %v1976, %v2116
          %2118 = vmatmul.bf16.gmra.mxu0 %v1995
          %v2119 = vpop.f32.mrf.mxu0
          %v2120 = vadd.f32 %v1976, %v2119
          %v2121 = vpop.f32.mrf.mxu0
          %v2122 = vadd.f32 %v1976, %v2121
          %2123 = vmatmul.bf16.gmra.mxu0 %v1997
          %v2124 = vpop.f32.mrf.mxu0
          %v2125 = vadd.f32 %v1976, %v2124
          %v2126 = vpop.f32.mrf.mxu0
          %v2127 = vadd.f32 %v1976, %v2126
          %2128 = vmatmul.bf16.gmra.mxu0 %v1999
          %v2129 = vpop.f32.mrf.mxu0
          %v2130 = vadd.f32 %v1976, %v2129
          %v2131 = vpop.f32.mrf.mxu0
          %v2132 = vadd.f32 %v1976, %v2131
          %2133 = vmatmul.bf16.gmra.mxu0 %v2001
          %v2134 = vpop.f32.mrf.mxu0
          %v2135 = vadd.f32 %v1976, %v2134
          %v2136 = vpop.f32.mrf.mxu0
          %v2137 = vadd.f32 %v1976, %v2136
          %2138 = vdwg.mxu0
          %v2139 = vld [vmem:[%s302] sm:$0xf]
          %v2140 = vld [vmem:[%s302 + $0x4] sm:$0xf]
          %v2141 = vld [vmem:[%s302 + $0x8] sm:$0xf]
          %v2142 = vld [vmem:[%s302 + $0xc] sm:$0xf]
          %v2143 = vld [vmem:[%s302 + $0x10] sm:$0xf]
          %v2144 = vld [vmem:[%s302 + $0x14] sm:$0xf]
          %v2145 = vld [vmem:[%s302 + $0x18] sm:$0xf]
          %v2146 = vld [vmem:[%s302 + $0x1c] sm:$0xf]
          %v2147 = vld [vmem:[%s302 + $0x20] sm:$0xf]
          %v2148 = vld [vmem:[%s302 + $0x24] sm:$0xf]
          %v2149 = vld [vmem:[%s302 + $0x28] sm:$0xf]
          %v2150 = vld [vmem:[%s302 + $0x2c] sm:$0xf]
          %v2151 = vld [vmem:[%s302 + $0x30] sm:$0xf]
          %v2152 = vld [vmem:[%s302 + $0x34] sm:$0xf]
          %v2153 = vld [vmem:[%s302 + $0x38] sm:$0xf]
          %v2154 = vld [vmem:[%s302 + $0x3c] sm:$0xf]
          %v2155 = vld [vmem:[%s302 + $0x40] sm:$0xf]
          %v2156 = vld [vmem:[%s302 + $0x44] sm:$0xf]
          %v2157 = vld [vmem:[%s302 + $0x48] sm:$0xf]
          %v2158 = vld [vmem:[%s302 + $0x4c] sm:$0xf]
          %v2159 = vld [vmem:[%s302 + $0x50] sm:$0xf]
          %v2160 = vld [vmem:[%s302 + $0x54] sm:$0xf]
          %v2161 = vld [vmem:[%s302 + $0x58] sm:$0xf]
          %v2162 = vld [vmem:[%s302 + $0x5c] sm:$0xf]
          %v2163 = vld [vmem:[%s302 + $0x60] sm:$0xf]
          %v2164 = vld [vmem:[%s302 + $0x64] sm:$0xf]
          %v2165 = vld [vmem:[%s302 + $0x68] sm:$0xf]
          %v2166 = vld [vmem:[%s302 + $0x6c] sm:$0xf]
          %v2167 = vld [vmem:[%s302 + $0x70] sm:$0xf]
          %v2168 = vld [vmem:[%s302 + $0x74] sm:$0xf]
          %v2169 = vld [vmem:[%s302 + $0x78] sm:$0xf]
          %v2170 = vld [vmem:[%s302 + $0x7c] sm:$0xf]
          %v2171 = vunpack.c.l.bf16 %v2139
          %v2172 = vunpack.c.l.bf16 %v2140
          %v2173 = vunpack.c.l.bf16 %v2141
          %v2174 = vunpack.c.l.bf16 %v2142
          %v2175 = vunpack.c.l.bf16 %v2143
          %v2176 = vunpack.c.l.bf16 %v2144
          %v2177 = vunpack.c.l.bf16 %v2145
          %v2178 = vunpack.c.l.bf16 %v2146
          %v2179 = vunpack.c.l.bf16 %v2147
          %v2180 = vunpack.c.l.bf16 %v2148
          %v2181 = vunpack.c.l.bf16 %v2149
          %v2182 = vunpack.c.l.bf16 %v2150
          %v2183 = vunpack.c.l.bf16 %v2151
          %v2184 = vunpack.c.l.bf16 %v2152
          %v2185 = vunpack.c.l.bf16 %v2153
          %v2186 = vunpack.c.l.bf16 %v2154
          %v2187 = vunpack.c.l.bf16 %v2155
          %v2188 = vunpack.c.l.bf16 %v2156
          %v2189 = vunpack.c.l.bf16 %v2157
          %v2190 = vunpack.c.l.bf16 %v2158
          %v2191 = vunpack.c.l.bf16 %v2159
          %v2192 = vunpack.c.l.bf16 %v2160
          %v2193 = vunpack.c.l.bf16 %v2161
          %v2194 = vunpack.c.l.bf16 %v2162
          %v2195 = vunpack.c.l.bf16 %v2163
          %v2196 = vunpack.c.l.bf16 %v2164
          %v2197 = vunpack.c.l.bf16 %v2165
          %v2198 = vunpack.c.l.bf16 %v2166
          %v2199 = vunpack.c.l.bf16 %v2167
          %v2200 = vunpack.c.l.bf16 %v2168
          %v2201 = vunpack.c.l.bf16 %v2169
          %v2202 = vunpack.c.l.bf16 %v2170
          %v2203 = vadd.f32 %v2171, %v2060
          %v2204 = vadd.f32 %v2172, %v2062
          %v2205 = vadd.f32 %v2173, %v2065
          %v2206 = vadd.f32 %v2174, %v2067
          %v2207 = vadd.f32 %v2175, %v2070
          %v2208 = vadd.f32 %v2176, %v2072
          %v2209 = vadd.f32 %v2177, %v2075
          %v2210 = vadd.f32 %v2178, %v2077
          %v2211 = vadd.f32 %v2179, %v2080
          %v2212 = vadd.f32 %v2180, %v2082
          %v2213 = vadd.f32 %v2181, %v2085
          %v2214 = vadd.f32 %v2182, %v2087
          %v2215 = vadd.f32 %v2183, %v2090
          %v2216 = vadd.f32 %v2184, %v2092
          %v2217 = vadd.f32 %v2185, %v2095
          %v2218 = vadd.f32 %v2186, %v2097
          %v2219 = vadd.f32 %v2187, %v2100
          %v2220 = vadd.f32 %v2188, %v2102
          %v2221 = vadd.f32 %v2189, %v2105
          %v2222 = vadd.f32 %v2190, %v2107
          %v2223 = vadd.f32 %v2191, %v2110
          %v2224 = vadd.f32 %v2192, %v2112
          %v2225 = vadd.f32 %v2193, %v2115
          %v2226 = vadd.f32 %v2194, %v2117
          %v2227 = vadd.f32 %v2195, %v2120
          %v2228 = vadd.f32 %v2196, %v2122
          %v2229 = vadd.f32 %v2197, %v2125
          %v2230 = vadd.f32 %v2198, %v2127
          %v2231 = vadd.f32 %v2199, %v2130
          %v2232 = vadd.f32 %v2200, %v2132
          %v2233 = vadd.f32 %v2201, %v2135
          %v2234 = vadd.f32 %v2202, %v2137
          %v2235 = vpack.c.bf16 %v2203, %v2203
          %v2236 = vpack.c.bf16 %v2204, %v2204
          %v2237 = vpack.c.bf16 %v2205, %v2205
          %v2238 = vpack.c.bf16 %v2206, %v2206
          %v2239 = vpack.c.bf16 %v2207, %v2207
          %v2240 = vpack.c.bf16 %v2208, %v2208
          %v2241 = vpack.c.bf16 %v2209, %v2209
          %v2242 = vpack.c.bf16 %v2210, %v2210
          %v2243 = vpack.c.bf16 %v2211, %v2211
          %v2244 = vpack.c.bf16 %v2212, %v2212
          %v2245 = vpack.c.bf16 %v2213, %v2213
          %v2246 = vpack.c.bf16 %v2214, %v2214
          %v2247 = vpack.c.bf16 %v2215, %v2215
          %v2248 = vpack.c.bf16 %v2216, %v2216
          %v2249 = vpack.c.bf16 %v2217, %v2217
          %v2250 = vpack.c.bf16 %v2218, %v2218
          %v2251 = vpack.c.bf16 %v2219, %v2219
          %v2252 = vpack.c.bf16 %v2220, %v2220
          %v2253 = vpack.c.bf16 %v2221, %v2221
          %v2254 = vpack.c.bf16 %v2222, %v2222
          %v2255 = vpack.c.bf16 %v2223, %v2223
          %v2256 = vpack.c.bf16 %v2224, %v2224
          %v2257 = vpack.c.bf16 %v2225, %v2225
          %v2258 = vpack.c.bf16 %v2226, %v2226
          %v2259 = vpack.c.bf16 %v2227, %v2227
          %v2260 = vpack.c.bf16 %v2228, %v2228
          %v2261 = vpack.c.bf16 %v2229, %v2229
          %v2262 = vpack.c.bf16 %v2230, %v2230
          %v2263 = vpack.c.bf16 %v2231, %v2231
          %v2264 = vpack.c.bf16 %v2232, %v2232
          %v2265 = vpack.c.bf16 %v2233, %v2233
          %v2266 = vpack.c.bf16 %v2234, %v2234
          %2267 = vst [vmem:[%s343] sm:$0xf] %v2235
          %2268 = vst [vmem:[%s343 + $0x4] sm:$0xf] %v2236
          %2269 = vst [vmem:[%s343 + $0x8] sm:$0xf] %v2237
          %2270 = vst [vmem:[%s343 + $0xc] sm:$0xf] %v2238
          %2271 = vst [vmem:[%s343 + $0x10] sm:$0xf] %v2239
          %2272 = vst [vmem:[%s343 + $0x14] sm:$0xf] %v2240
          %2273 = vst [vmem:[%s343 + $0x18] sm:$0xf] %v2241
          %2274 = vst [vmem:[%s343 + $0x1c] sm:$0xf] %v2242
          %2275 = vst [vmem:[%s343 + $0x20] sm:$0xf] %v2243
          %2276 = vst [vmem:[%s343 + $0x24] sm:$0xf] %v2244
          %2277 = vst [vmem:[%s343 + $0x28] sm:$0xf] %v2245
          %2278 = vst [vmem:[%s343 + $0x2c] sm:$0xf] %v2246
          %2279 = vst [vmem:[%s343 + $0x30] sm:$0xf] %v2247
          %2280 = vst [vmem:[%s343 + $0x34] sm:$0xf] %v2248
          %2281 = vst [vmem:[%s343 + $0x38] sm:$0xf] %v2249
          %2282 = vst [vmem:[%s343 + $0x3c] sm:$0xf] %v2250
          %2283 = vst [vmem:[%s343 + $0x40] sm:$0xf] %v2251
          %2284 = vst [vmem:[%s343 + $0x44] sm:$0xf] %v2252
          %2285 = vst [vmem:[%s343 + $0x48] sm:$0xf] %v2253
          %2286 = vst [vmem:[%s343 + $0x4c] sm:$0xf] %v2254
          %2287 = vst [vmem:[%s343 + $0x50] sm:$0xf] %v2255
          %2288 = vst [vmem:[%s343 + $0x54] sm:$0xf] %v2256
          %2289 = vst [vmem:[%s343 + $0x58] sm:$0xf] %v2257
          %2290 = vst [vmem:[%s343 + $0x5c] sm:$0xf] %v2258
          %2291 = vst [vmem:[%s343 + $0x60] sm:$0xf] %v2259
          %2292 = vst [vmem:[%s343 + $0x64] sm:$0xf] %v2260
          %2293 = vst [vmem:[%s343 + $0x68] sm:$0xf] %v2261
          %2294 = vst [vmem:[%s343 + $0x6c] sm:$0xf] %v2262
          %2295 = vst [vmem:[%s343 + $0x70] sm:$0xf] %v2263
          %2296 = vst [vmem:[%s343 + $0x74] sm:$0xf] %v2264
          %2297 = vst [vmem:[%s343 + $0x78] sm:$0xf] %v2265
          %2298 = vst [vmem:[%s343 + $0x7c] sm:$0xf] %v2266
        $region68: #{tpu_custom_call.1} parent=47 // pred_fallthru
          _
        %s2299 = sand.u32 %s197, 1
        %s2300 = scalar_lea.sflag [#allocation6], %s2299
        %s2301 = sand.u32 %s197, 1
        %s2302 = smul.addr %s2301, 128
        %s2303 = scalar_lea.vmem [#allocation10], %s2302
        // Predicated region
        $region69: #{tpu_custom_call.1} parent=47 // pred_check
          %p2304 = pneg %p207
        $region70: #{tpu_custom_call.1} parent=47 // pred_check_branch
          %2306 = sbr.rel (%p2304) target = $region72
        $region71: #{tpu_custom_call.1} parent=47 // pred_region
          %2308 = vsyncadd %s2300, 0
          %s2309 = smul.addr %s29, 32
          %s2310 = smul.addr %s2309, 4
          %s2311 = scalar_lea.hbm %s7, %s2310
          %s2312 = sshll.u32 %s2303, 4
          %s2313 = int_to_ptr.vmem [resolvable:$true] %s2312
          %s2314 = sshll.u32 %s2311, 4
          %s2315 = int_to_ptr.hbm [resolvable:$true] %s2314
          %2320 = dma.vmem_to_hbm [thread:$0]  %s2313, 2048, %s2315, %s2300, 64, 64, 4
        $region72: #{tpu_custom_call.1} parent=47 // pred_fallthru
          _
      $region48: #{tpu_custom_call.1} parent=5 // pred_fallthru
        _
      %p2321 = scmp.le.s32.totalorder 2, %s20
      // Predicated region
      $region73: #{tpu_custom_call.1} parent=5 // pred_check
        %p2322 = pneg %p2321
      $region74: #{tpu_custom_call.1} parent=5 // pred_check_branch
        %2324 = sbr.rel (%p2322) target = $region76
      $region75: #{tpu_custom_call.1} parent=5 // pred_region
        %s2325 = ssub.s32 %s20, 2
        // Predicated region
        $region77: #{tpu_custom_call.1} parent=75 // pred_check
          %p2326 = pneg %p213
        $region78: #{tpu_custom_call.1} parent=75 // pred_check_branch
          %2328 = sbr.rel (%p2326) target = $region80
        $region79: #{tpu_custom_call.1} parent=75 // pred_region
          %s2329 = sand.u32 %s198, 1
          %s2330 = scalar_lea.sflag [#allocation6], %s2329
          %s2331 = sand.u32 %s198, 1
          %s2332 = smul.addr %s2331, 128
          %s2333 = scalar_lea.vmem [#allocation10], %s2332
          %2335 = dma.done %s2330, 2048
        $region80: #{tpu_custom_call.1} parent=75 // pred_fallthru
          _
      $region76: #{tpu_custom_call.1} parent=5 // pred_fallthru
        _
    $region6: #{tpu_custom_call.1} parent=1 // loop_footer
      %s24 = sadd.s32 1, %s20
    $region7: #{tpu_custom_call.1} parent=1 // loop_footer_branch
      %19 = sbr.rel target = $region3
    $region8: #{tpu_custom_call.1} parent=1 // loop_exit
      _
    %2336 = vsyncpa [#allocation5], 1
    %s2337 = scalar_lea.sflag [#allocation5], 1
    %2338 = vsyncpa %s2337, 1
    %2339 = vsyncpa [#allocation8], 1
    %2340 = vsyncpa [#allocation6], 1
    %s2341 = scalar_lea.sflag [#allocation6], 1
    %2342 = vsyncpa %s2341, 1

</llo_original>
